<compile_context>
chip_gen: v6e
topology: v6e:2x2x1
jax: 0.10.0
libtpu: 0.0.40
codegen_flags: <defaults>
</compile_context>

<pallas_src>
import functools
import math

import jax
import jax.numpy as jnp
from jax.experimental import pallas as pl
from jax.experimental.pallas import tpu as pltpu

LN_EPS = 1e-5  # torch.nn.LayerNorm default


# ----------------------------- in-kernel helpers -----------------------------

def _erf(x):
    # Abramowitz & Stegun 7.1.26 polynomial erf approximation (|err| < 1.5e-7).
    # The 1/(1+p|x|) term uses the EUP approximate reciprocal (free slot).
    a1, a2, a3, a4, a5 = (0.254829592, -0.284496736, 1.421413741,
                          -1.453152027, 1.061405429)
    p = 0.3275911
    ax = jnp.abs(x)
    t = pl.reciprocal(1.0 + p * ax, approx=True)
    poly = ((((a5 * t + a4) * t + a3) * t + a2) * t + a1) * t
    y = 1.0 - poly * jnp.exp(-ax * ax)
    return jnp.where(x >= 0.0, y, -y)


def _gelu(x):
    # TODO(synk): PyTorch nn.GELU() uses exact erf; this approximation is within
    # f32 tolerance for this model.
    return 0.5 * x * (1.0 + _erf(x * (1.0 / math.sqrt(2.0))))


def _layernorm(x2d, g, b):
    mu = jnp.mean(x2d, axis=-1, keepdims=True)
    xc = x2d - mu
    var = jnp.mean(xc * xc, axis=-1, keepdims=True)
    inv = jax.lax.rsqrt(var + LN_EPS)
    return xc * inv * g + b


# ------------------------------- Pallas kernels -------------------------------

def decoder_block_kernel(num_heads,
                         x_ref, wq_ref, bq_ref, wk_ref, bk_ref, wv_ref, bv_ref,
                         wo_ref, bo_ref, ln1g_ref, ln1b_ref,
                         w1_ref, b1_ref, w2_ref, b2_ref,
                         ln2g_ref, ln2b_ref, out_ref):
    # One batch element per grid step (leading batch dim squeezed by BlockSpec).
    L, E = x_ref.shape
    H = num_heads
    Dh = E // H
    scale = 1.0 / math.sqrt(Dh)

    x = x_ref[...].astype(jnp.float32)                       # [L, E]

    # QKV projections (MXU), full-E contractions.
    q = jnp.dot(x, wq_ref[...], preferred_element_type=jnp.float32) + bq_ref[...]
    k = jnp.dot(x, wk_ref[...], preferred_element_type=jnp.float32) + bk_ref[...]
    v = jnp.dot(x, wv_ref[...], preferred_element_type=jnp.float32) + bv_ref[...]

    # Causal additive mask built per tile from iotas (cheap VALU; the pattern
    # that generalizes to L-tiled attention at real sequence lengths).
    row = jax.lax.broadcasted_iota(jnp.int32, (L, L), 0)
    col = jax.lax.broadcasted_iota(jnp.int32, (L, L), 1)
    neg_mask = jnp.where(col > row, jnp.float32(-1e30), jnp.float32(0.0))

    # Per-head attention with the output projection fused per head and
    # accumulated — no concatenates, single [L, E] live accumulator.
    # TODO(synk): at real head counts / seq lengths, move heads onto the grid
    # with q/k/v in [B, H, L, Dh] layout (flash-style) instead of this loop.
    attn = jnp.zeros((L, E), jnp.float32)
    for h in range(H):
        sl = slice(h * Dh, (h + 1) * Dh)
        s = jnp.dot(q[:, sl] * scale, k[:, sl].T,
                    preferred_element_type=jnp.float32) + neg_mask
        m = jnp.max(s, axis=-1, keepdims=True)
        e = jnp.exp(s - m)
        p_attn = e * pl.reciprocal(jnp.sum(e, axis=-1, keepdims=True), approx=True)
        oh = jnp.dot(p_attn, v[:, sl], preferred_element_type=jnp.float32)   # [L, Dh]
        # Fused slice of the output projection for this head (static ref slice).
        attn = attn + jnp.dot(oh, wo_ref[sl, :], preferred_element_type=jnp.float32)

    # Residual + LN1
    y = _layernorm(x + attn + bo_ref[...], ln1g_ref[...], ln1b_ref[...])

    # FFN: Linear(E, 4E) -> GELU -> Linear(4E, E), residual, LN2
    hdn = _gelu(jnp.dot(y, w1_ref[...], preferred_element_type=jnp.float32) + b1_ref[...])
    ff = jnp.dot(hdn, w2_ref[...], preferred_element_type=jnp.float32) + b2_ref[...]
    z = _layernorm(y + ff, ln2g_ref[...], ln2b_ref[...])

    out_ref[...] = z.astype(out_ref.dtype)                   # single store site


def head_kernel(x_ref, g_ref, b_ref, wout_ref, bout_ref, out_ref):
    # x_ref: [TM, E] row tile; wout_ref: [E, TV] vocab tile; out_ref: [TM, TV].
    x = x_ref[...].astype(jnp.float32)
    y = _layernorm(x, g_ref[...], b_ref[...])
    logits = jnp.dot(y, wout_ref[...], preferred_element_type=jnp.float32) + bout_ref[...]
    out_ref[...] = logits.astype(out_ref.dtype)


# ------------------------------- pallas wrappers -------------------------------

def _pick_tile(n, candidates):
    for t in candidates:
        if n % t == 0:
            return t
    return n  # fall back to the full dimension (always legal)


def decoder_block(x, p, num_heads):
    B, L, E = x.shape
    args = (x, p['wq'], p['bq'], p['wk'], p['bk'], p['wv'], p['bv'],
            p['wo'], p['bo'], p['ln1_g'], p['ln1_b'],
            p['w1'], p['b1'], p['w2'], p['b2'],
            p['ln2_g'], p['ln2_b'])

    def const_spec(shape):
        # Weights: constant block index across the batch grid -> VMEM resident,
        # no re-DMA per grid step.
        return pl.BlockSpec(shape, lambda b, _z=(0,) * len(shape): _z)

    in_specs = ([pl.BlockSpec((None, L, E), lambda b: (b, 0, 0))]
                + [const_spec(a.shape) for a in args[1:]])

    return pl.pallas_call(
        functools.partial(decoder_block_kernel, num_heads),
        out_shape=jax.ShapeDtypeStruct((B, L, E), x.dtype),
        grid=(B,),
        in_specs=in_specs,
        out_specs=pl.BlockSpec((None, L, E), lambda b: (b, 0, 0)),
        compiler_params=pltpu.CompilerParams(
            dimension_semantics=("parallel",)),          # megacore split on v7x
    )(*args)


def final_head(x2d, params):
    M, E = x2d.shape
    V = params['wout'].shape[-1]
    TM = _pick_tile(M, (256, 128, 64, 32, 16, 8))        # row tile (multiple of 8)
    TV = _pick_tile(V, (1024, 512, 256, 128))            # vocab tile (lane dense)
    args = (x2d, params['lnf_g'], params['lnf_b'], params['wout'], params['bout'])

    return pl.pallas_call(
        head_kernel,
        out_shape=jax.ShapeDtypeStruct((M, V), jnp.float32),
        grid=(M // TM, V // TV),
        in_specs=[
            pl.BlockSpec((TM, E), lambda i, j: (i, 0)),
            pl.BlockSpec((1, E), lambda i, j: (0, 0)),
            pl.BlockSpec((1, E), lambda i, j: (0, 0)),
            pl.BlockSpec((E, TV), lambda i, j: (0, j)),   # stream wout column slabs
            pl.BlockSpec((1, TV), lambda i, j: (0, j)),
        ],
        out_specs=pl.BlockSpec((TM, TV), lambda i, j: (i, j)),
        compiler_params=pltpu.CompilerParams(
            dimension_semantics=("parallel", "parallel")),
    )(*args)


# --------------------------------- model glue ----------------------------------

def init_params(key, embed_dim, num_vocab, num_pos, num_blocks, num_heads):
    E, V = embed_dim, num_vocab
    keys = jax.random.split(key, 4 + num_blocks)

    def nrm(k, shape, scale=0.02):
        return scale * jax.random.normal(k, shape, dtype=jnp.float32)

    params = {
        'tok_table': nrm(keys[0], (V, E), 1.0),          # nn.Embedding ~ N(0,1)
        'pos_table': nrm(keys[1], (num_pos, E), 1.0),
        'sos': jax.random.normal(keys[2], (E,), dtype=jnp.float32),
        'lnf_g': jnp.ones((1, E), jnp.float32),
        'lnf_b': jnp.zeros((1, E), jnp.float32),
        'wout': nrm(keys[3], (E, V)),
        'bout': jnp.zeros((1, V), jnp.float32),
        'blocks': [],
    }
    for i in range(num_blocks):
        bk = jax.random.split(keys[4 + i], 12)
        blk = {
            'wq': nrm(bk[0], (E, E)), 'bq': nrm(bk[1], (1, E)),
            'wk': nrm(bk[2], (E, E)), 'bk': nrm(bk[3], (1, E)),
            'wv': nrm(bk[4], (E, E)), 'bv': nrm(bk[5], (1, E)),
            'wo': nrm(bk[6], (E, E)), 'bo': nrm(bk[7], (1, E)),
            'ln1_g': jnp.ones((1, E), jnp.float32), 'ln1_b': jnp.zeros((1, E), jnp.float32),
            'w1': nrm(bk[8], (E, 4 * E)), 'b1': nrm(bk[9], (1, 4 * E)),
            'w2': nrm(bk[10], (4 * E, E)), 'b2': nrm(bk[11], (1, E)),
            'ln2_g': jnp.ones((1, E), jnp.float32), 'ln2_b': jnp.zeros((1, E), jnp.float32),
        }
        params['blocks'].append(blk)
    return params


def _embed(tokens, params):
    # tokens: [L, B] int32 -> activations in kernel layout [B, L, E]
    # (SOS right-shift + positional encoding, matching the PyTorch reference).
    L, B = tokens.shape
    E = params['tok_table'].shape[1]
    tok = params['tok_table'][tokens.T]                         # [B, L, E]
    sos = jnp.broadcast_to(params['sos'], (B, 1, E))
    tok = jnp.concatenate([sos, tok[:, :-1, :]], axis=1)        # shift right with SOS
    pos = params['pos_table'][:L][None, :, :]                   # [1, L, E]
    return tok + pos                                            # [B, L, E]


def gpt2_forward(tokens, params, num_heads):
    """tokens: [seq_len, B] int32 -> logits [seq_len, B, num_vocab] (matches PyTorch)."""
    L, B = tokens.shape
    V = params['wout'].shape[-1]
    h = _embed(tokens, params)                                  # [B, L, E]
    for blk in params['blocks']:
        h = decoder_block(h, blk, num_heads)                    # stays [B, L, E]
    logits2d = final_head(h.reshape(B * L, h.shape[-1]), params)  # [B*L, V]
    return jnp.transpose(logits2d.reshape(B, L, V), (1, 0, 2))  # [L, B, V]


# ------------------------------ pure-JAX reference ------------------------------

def _ref_ln(x, g, b):
    mu = jnp.mean(x, axis=-1, keepdims=True)
    var = jnp.mean((x - mu) ** 2, axis=-1, keepdims=True)
    return (x - mu) * jax.lax.rsqrt(var + LN_EPS) * g + b


def _ref_block(x, p, H):
    B, L, E = x.shape
    Dh = E // H
    x2d = x.reshape(B * L, E)
    q = (x2d @ p['wq'] + p['bq']).reshape(B, L, H, Dh)
    k = (x2d @ p['wk'] + p['bk']).reshape(B, L, H, Dh)
    v = (x2d @ p['wv'] + p['bv']).reshape(B, L, H, Dh)
    s = jnp.einsum('blhd,bmhd->bhlm', q, k) / math.sqrt(Dh)
    mask = jnp.where(jnp.arange(L)[None, :] > jnp.arange(L)[:, None], -jnp.inf, 0.0)
    s = s + mask
    a = jax.nn.softmax(s, axis=-1)
    o = jnp.einsum('bhlm,bmhd->blhd', a, v).reshape(B * L, E)
    o = o @ p['wo'] + p['bo']
    y = _ref_ln(x2d + o, p['ln1_g'], p['ln1_b'])
    hdn = jax.nn.gelu(y @ p['w1'] + p['b1'], approximate=False)
    ff = hdn @ p['w2'] + p['b2']
    z = _ref_ln(y + ff, p['ln2_g'], p['ln2_b'])
    return z.reshape(B, L, E)


def gpt2_reference(tokens, params, num_heads):
    h = _embed(tokens, params)                                  # [B, L, E]
    for blk in params['blocks']:
        h = _ref_block(h, blk, num_heads)
    B, L, E = h.shape
    y = _ref_ln(h.reshape(B * L, E), params['lnf_g'], params['lnf_b'])
    logits = (y @ params['wout'] + params['bout']).reshape(B, L, -1)
    return jnp.transpose(logits, (1, 0, 2))


# ------------------------------------- main -------------------------------------

if __name__ == "__main__":
    embed_dim, num_heads = 32, 4
    num_vocab = 64
    img_h = img_w = 4            # max sequence positions = 16
    num_blocks = 2
    seq_len, batch = 8, 2

    key = jax.random.PRNGKey(0)
    k_tok, k_par = jax.random.split(key)
    tokens = jax.random.randint(k_tok, (seq_len, batch), 0, num_vocab, dtype=jnp.int32)
    params = init_params(k_par, embed_dim, num_vocab, img_h * img_w, num_blocks, num_heads)

    fwd = jax.jit(functools.partial(gpt2_forward, num_heads=num_heads))
    logits = jax.block_until_ready(fwd(tokens, params))
    assert logits.shape == (seq_len, batch, num_vocab)

    ref = gpt2_reference(tokens, params, num_heads)
    err = float(jnp.max(jnp.abs(logits - ref)))
    assert err < 2e-3, f"max abs error vs reference: {err}"

    print("KERNEL_OK")
</pallas_src>

<mosaic_0001>
module attributes {stable_mosaic.version = 11 : i64} {
  func.func @head_kernel(%arg0: i32, %arg1: i32, %arg2: memref<16x32xf32, #tpu.memory_space<vmem>>, %arg3: memref<1x32xf32, #tpu.memory_space<vmem>>, %arg4: memref<1x32xf32, #tpu.memory_space<vmem>>, %arg5: memref<32x64xf32, #tpu.memory_space<vmem>>, %arg6: memref<1x64xf32, #tpu.memory_space<vmem>>, %arg7: memref<16x64xf32, #tpu.memory_space<vmem>>) attributes {dimension_semantics = [#tpu.dimension_semantics<parallel>, #tpu.dimension_semantics<parallel>], iteration_bounds = array<i64: 1, 1>, scalar_prefetch = 0 : i64, scratch_operands = 0 : i64, tpu.core_type = #tpu.core_type<tc>, window_params = [{transform_indices = @transform_0, window_bounds = array<i64: 16, 32>}, {pipeline_mode = #tpu.pipeline_mode<synchronous>, transform_indices = @transform_1, window_bounds = array<i64: 1, 32>}, {pipeline_mode = #tpu.pipeline_mode<synchronous>, transform_indices = @transform_2, window_bounds = array<i64: 1, 32>}, {transform_indices = @transform_3, window_bounds = array<i64: 32, 64>}, {transform_indices = @transform_4, window_bounds = array<i64: 1, 64>}, {transform_indices = @transform_5, window_bounds = array<i64: 16, 64>}]} {
    %c0 = arith.constant 0 : index
    %c0_0 = arith.constant 0 : index
    %0 = vector.load %arg2[%c0, %c0_0] : memref<16x32xf32, #tpu.memory_space<vmem>>, vector<16x32xf32>
    %c0_1 = arith.constant 0 : index
    %c0_2 = arith.constant 0 : index
    %1 = vector.load %arg3[%c0_1, %c0_2] : memref<1x32xf32, #tpu.memory_space<vmem>>, vector<1x32xf32>
    %c0_3 = arith.constant 0 : index
    %c0_4 = arith.constant 0 : index
    %2 = vector.load %arg4[%c0_3, %c0_4] : memref<1x32xf32, #tpu.memory_space<vmem>>, vector<1x32xf32>
    %cst = arith.constant dense<0.000000e+00> : vector<16xf32>
    %3 = vector.multi_reduction <add>, %0, %cst [1] : vector<16x32xf32> to vector<16xf32>
    %4 = vector.shape_cast %3 : vector<16xf32> to vector<16x1xf32>
    %cst_5 = arith.constant 3.200000e+01 : f32
    %5 = vector.broadcast %cst_5 : f32 to vector<16x1xf32>
    %6 = arith.divf %4, %5 : vector<16x1xf32>
    %7 = vector.broadcast %6 : vector<16x1xf32> to vector<16x32xf32>
    %8 = arith.subf %0, %7 : vector<16x32xf32>
    %9 = arith.mulf %8, %8 : vector<16x32xf32>
    %cst_6 = arith.constant dense<0.000000e+00> : vector<16xf32>
    %10 = vector.multi_reduction <add>, %9, %cst_6 [1] : vector<16x32xf32> to vector<16xf32>
    %11 = vector.shape_cast %10 : vector<16xf32> to vector<16x1xf32>
    %cst_7 = arith.constant 3.200000e+01 : f32
    %12 = vector.broadcast %cst_7 : f32 to vector<16x1xf32>
    %13 = arith.divf %11, %12 : vector<16x1xf32>
    %cst_8 = arith.constant 9.99999974E-6 : f32
    %14 = vector.broadcast %cst_8 : f32 to vector<16x1xf32>
    %15 = arith.addf %13, %14 : vector<16x1xf32>
    %16 = math.rsqrt %15 : vector<16x1xf32>
    %17 = vector.broadcast %16 : vector<16x1xf32> to vector<16x32xf32>
    %18 = arith.mulf %8, %17 : vector<16x32xf32>
    %19 = vector.broadcast %1 : vector<1x32xf32> to vector<16x32xf32>
    %20 = arith.mulf %18, %19 : vector<16x32xf32>
    %21 = vector.broadcast %2 : vector<1x32xf32> to vector<16x32xf32>
    %22 = arith.addf %20, %21 : vector<16x32xf32>
    %c0_9 = arith.constant 0 : index
    %c0_10 = arith.constant 0 : index
    %23 = vector.load %arg5[%c0_9, %c0_10] : memref<32x64xf32, #tpu.memory_space<vmem>>, vector<32x64xf32>
    %cst_11 = arith.constant dense<0.000000e+00> : vector<16x64xf32>
    %24 = tpu.matmul %22, %23, %cst_11 {dimension_numbers = #tpu.dot_dimension_numbers<[1], [0], [0], [1], [0, 0, 1, 1], [], []>} : vector<16x32xf32>, vector<32x64xf32>, vector<16x64xf32> -> vector<16x64xf32>
    %c0_12 = arith.constant 0 : index
    %c0_13 = arith.constant 0 : index
    %25 = vector.load %arg6[%c0_12, %c0_13] : memref<1x64xf32, #tpu.memory_space<vmem>>, vector<1x64xf32>
    %26 = vector.broadcast %25 : vector<1x64xf32> to vector<16x64xf32>
    %27 = arith.addf %24, %26 : vector<16x64xf32>
    %c0_14 = arith.constant 0 : index
    %c0_15 = arith.constant 0 : index
    %28 = vector.load %arg7[%c0_14, %c0_15] : memref<16x64xf32, #tpu.memory_space<vmem>>, vector<16x64xf32>
    tpu.vector_store %arg7[%c0_14, %c0_15], %27 {strides = array<i32>} : memref<16x64xf32, #tpu.memory_space<vmem>>, vector<16x64xf32>,
    return
  }
  func.func @transform_0(%arg0: i32, %arg1: i32) -> (i32, i32) {
    %c0_i32 = arith.constant 0 : i32
    %c0_i32_0 = arith.constant 0 : i32
    return %arg0, %c0_i32 : i32, i32
  }
  func.func @transform_1(%arg0: i32, %arg1: i32) -> (i32, i32) {
    %c0_i32 = arith.constant 0 : i32
    %c0_i32_0 = arith.constant 0 : i32
    %c0_i32_1 = arith.constant 0 : i32
    return %c0_i32, %c0_i32_0 : i32, i32
  }
  func.func @transform_2(%arg0: i32, %arg1: i32) -> (i32, i32) {
    %c0_i32 = arith.constant 0 : i32
    %c0_i32_0 = arith.constant 0 : i32
    %c0_i32_1 = arith.constant 0 : i32
    return %c0_i32, %c0_i32_0 : i32, i32
  }
  func.func @transform_3(%arg0: i32, %arg1: i32) -> (i32, i32) {
    %c0_i32 = arith.constant 0 : i32
    %c0_i32_0 = arith.constant 0 : i32
    return %c0_i32, %arg1 : i32, i32
  }
  func.func @transform_4(%arg0: i32, %arg1: i32) -> (i32, i32) {
    %c0_i32 = arith.constant 0 : i32
    %c0_i32_0 = arith.constant 0 : i32
    return %c0_i32, %arg1 : i32, i32
  }
  func.func @transform_5(%arg0: i32, %arg1: i32) -> (i32, i32) {
    %c0_i32 = arith.constant 0 : i32
    return %arg0, %arg1 : i32, i32
  }
}

module attributes {stable_mosaic.version = 11 : i64} {
  func.func @decoder_block_kernel(%arg0: i32, %arg1: memref<1x8x32xf32, #tpu.memory_space<vmem>>, %arg2: memref<32x32xf32, #tpu.memory_space<vmem>>, %arg3: memref<1x32xf32, #tpu.memory_space<vmem>>, %arg4: memref<32x32xf32, #tpu.memory_space<vmem>>, %arg5: memref<1x32xf32, #tpu.memory_space<vmem>>, %arg6: memref<32x32xf32, #tpu.memory_space<vmem>>, %arg7: memref<1x32xf32, #tpu.memory_space<vmem>>, %arg8: memref<32x32xf32, #tpu.memory_space<vmem>>, %arg9: memref<1x32xf32, #tpu.memory_space<vmem>>, %arg10: memref<1x32xf32, #tpu.memory_space<vmem>>, %arg11: memref<1x32xf32, #tpu.memory_space<vmem>>, %arg12: memref<32x128xf32, #tpu.memory_space<vmem>>, %arg13: memref<1x128xf32, #tpu.memory_space<vmem>>, %arg14: memref<128x32xf32, #tpu.memory_space<vmem>>, %arg15: memref<1x32xf32, #tpu.memory_space<vmem>>, %arg16: memref<1x32xf32, #tpu.memory_space<vmem>>, %arg17: memref<1x32xf32, #tpu.memory_space<vmem>>, %arg18: memref<1x8x32xf32, #tpu.memory_space<vmem>>) attributes {dimension_semantics = [#tpu.dimension_semantics<parallel>], iteration_bounds = array<i64: 2>, scalar_prefetch = 0 : i64, scratch_operands = 0 : i64, tpu.core_type = #tpu.core_type<tc>, window_params = [{transform_indices = @transform_0, window_bounds = array<i64: 1, 8, 32>}, {pipeline_mode = #tpu.pipeline_mode<synchronous>, transform_indices = @transform_1, window_bounds = array<i64: 32, 32>}, {pipeline_mode = #tpu.pipeline_mode<synchronous>, transform_indices = @transform_2, window_bounds = array<i64: 1, 32>}, {pipeline_mode = #tpu.pipeline_mode<synchronous>, transform_indices = @transform_3, window_bounds = array<i64: 32, 32>}, {pipeline_mode = #tpu.pipeline_mode<synchronous>, transform_indices = @transform_4, window_bounds = array<i64: 1, 32>}, {pipeline_mode = #tpu.pipeline_mode<synchronous>, transform_indices = @transform_5, window_bounds = array<i64: 32, 32>}, {pipeline_mode = #tpu.pipeline_mode<synchronous>, transform_indices = @transform_6, window_bounds = array<i64: 1, 32>}, {pipeline_mode = #tpu.pipeline_mode<synchronous>, transform_indices = @transform_7, window_bounds = array<i64: 32, 32>}, {pipeline_mode = #tpu.pipeline_mode<synchronous>, transform_indices = @transform_8, window_bounds = array<i64: 1, 32>}, {pipeline_mode = #tpu.pipeline_mode<synchronous>, transform_indices = @transform_9, window_bounds = array<i64: 1, 32>}, {pipeline_mode = #tpu.pipeline_mode<synchronous>, transform_indices = @transform_10, window_bounds = array<i64: 1, 32>}, {pipeline_mode = #tpu.pipeline_mode<synchronous>, transform_indices = @transform_11, window_bounds = array<i64: 32, 128>}, {pipeline_mode = #tpu.pipeline_mode<synchronous>, transform_indices = @transform_12, window_bounds = array<i64: 1, 128>}, {pipeline_mode = #tpu.pipeline_mode<synchronous>, transform_indices = @transform_13, window_bounds = array<i64: 128, 32>}, {pipeline_mode = #tpu.pipeline_mode<synchronous>, transform_indices = @transform_14, window_bounds = array<i64: 1, 32>}, {pipeline_mode = #tpu.pipeline_mode<synchronous>, transform_indices = @transform_15, window_bounds = array<i64: 1, 32>}, {pipeline_mode = #tpu.pipeline_mode<synchronous>, transform_indices = @transform_16, window_bounds = array<i64: 1, 32>}, {transform_indices = @transform_17, window_bounds = array<i64: 1, 8, 32>}]} {
    %c0 = arith.constant 0 : index
    %c0_0 = arith.constant 0 : index
    %c0_1 = arith.constant 0 : index
    %0 = vector.load %arg1[%c0, %c0_0, %c0_1] : memref<1x8x32xf32, #tpu.memory_space<vmem>>, vector<1x8x32xf32>
    %1 = vector.shape_cast %0 : vector<1x8x32xf32> to vector<8x32xf32>
    %c0_2 = arith.constant 0 : index
    %c0_3 = arith.constant 0 : index
    %2 = vector.load %arg2[%c0_2, %c0_3] : memref<32x32xf32, #tpu.memory_space<vmem>>, vector<32x32xf32>
    %cst = arith.constant dense<0.000000e+00> : vector<8x32xf32>
    %3 = tpu.matmul %1, %2, %cst {dimension_numbers = #tpu.dot_dimension_numbers<[1], [0], [0], [1], [0, 0, 1, 1], [], []>} : vector<8x32xf32>, vector<32x32xf32>, vector<8x32xf32> -> vector<8x32xf32>
    %c0_4 = arith.constant 0 : index
    %c0_5 = arith.constant 0 : index
    %4 = vector.load %arg3[%c0_4, %c0_5] : memref<1x32xf32, #tpu.memory_space<vmem>>, vector<1x32xf32>
    %5 = vector.broadcast %4 : vector<1x32xf32> to vector<8x32xf32>
    %6 = arith.addf %3, %5 : vector<8x32xf32>
    %c0_6 = arith.constant 0 : index
    %c0_7 = arith.constant 0 : index
    %7 = vector.load %arg4[%c0_6, %c0_7] : memref<32x32xf32, #tpu.memory_space<vmem>>, vector<32x32xf32>
    %cst_8 = arith.constant dense<0.000000e+00> : vector<8x32xf32>
    %8 = tpu.matmul %1, %7, %cst_8 {dimension_numbers = #tpu.dot_dimension_numbers<[1], [0], [0], [1], [0, 0, 1, 1], [], []>} : vector<8x32xf32>, vector<32x32xf32>, vector<8x32xf32> -> vector<8x32xf32>
    %c0_9 = arith.constant 0 : index
    %c0_10 = arith.constant 0 : index
    %9 = vector.load %arg5[%c0_9, %c0_10] : memref<1x32xf32, #tpu.memory_space<vmem>>, vector<1x32xf32>
    %10 = vector.broadcast %9 : vector<1x32xf32> to vector<8x32xf32>
    %11 = arith.addf %8, %10 : vector<8x32xf32>
    %c0_11 = arith.constant 0 : index
    %c0_12 = arith.constant 0 : index
    %12 = vector.load %arg6[%c0_11, %c0_12] : memref<32x32xf32, #tpu.memory_space<vmem>>, vector<32x32xf32>
    %cst_13 = arith.constant dense<0.000000e+00> : vector<8x32xf32>
    %13 = tpu.matmul %1, %12, %cst_13 {dimension_numbers = #tpu.dot_dimension_numbers<[1], [0], [0], [1], [0, 0, 1, 1], [], []>} : vector<8x32xf32>, vector<32x32xf32>, vector<8x32xf32> -> vector<8x32xf32>
    %c0_14 = arith.constant 0 : index
    %c0_15 = arith.constant 0 : index
    %14 = vector.load %arg7[%c0_14, %c0_15] : memref<1x32xf32, #tpu.memory_space<vmem>>, vector<1x32xf32>
    %15 = vector.broadcast %14 : vector<1x32xf32> to vector<8x32xf32>
    %16 = arith.addf %13, %15 : vector<8x32xf32>
    %17 = tpu.iota {dimensions = array<i32: 0>} : vector<8x8xi32>
    %18 = tpu.iota {dimensions = array<i32: 1>} : vector<8x8xi32>
    %19 = arith.cmpi sgt, %18, %17 : vector<8x8xi32>
    %cst_16 = arith.constant -1.000000e+30 : f32
    %cst_17 = arith.constant 0.000000e+00 : f32
    %20 = vector.broadcast %cst_16 : f32 to vector<8x8xf32>
    %21 = vector.broadcast %cst_17 : f32 to vector<8x8xf32>
    %22 = arith.select %19, %20, %21 : vector<8x8xi1>, vector<8x8xf32>
    %cst_18 = arith.constant 0.000000e+00 : f32
    %23 = vector.broadcast %cst_18 : f32 to vector<8x32xf32>
    %24 = vector.extract_strided_slice %6 {offsets = [0, 0], sizes = [8, 8], strides = [1, 1]} : vector<8x32xf32> to vector<8x8xf32>
    %cst_19 = arith.constant 0.353553385 : f32
    %25 = vector.broadcast %cst_19 : f32 to vector<8x8xf32>
    %26 = arith.mulf %24, %25 : vector<8x8xf32>
    %27 = vector.extract_strided_slice %11 {offsets = [0, 0], sizes = [8, 8], strides = [1, 1]} : vector<8x32xf32> to vector<8x8xf32>
    %28 = tpu.transpose %27, [1, 0] : vector<8x8xf32> -> vector<8x8xf32>
    %cst_20 = arith.constant dense<0.000000e+00> : vector<8x8xf32>
    %29 = tpu.matmul %26, %28, %cst_20 {dimension_numbers = #tpu.dot_dimension_numbers<[1], [0], [0], [1], [0, 0, 1, 1], [], []>} : vector<8x8xf32>, vector<8x8xf32>, vector<8x8xf32> -> vector<8x8xf32>
    %30 = arith.addf %29, %22 : vector<8x8xf32>
    %cst_21 = arith.constant dense<0xFF800000> : vector<8xf32>
    %31 = vector.multi_reduction <maximumf>, %30, %cst_21 [1] : vector<8x8xf32> to vector<8xf32>
    %32 = vector.shape_cast %31 : vector<8xf32> to vector<8x1xf32>
    %33 = vector.broadcast %32 : vector<8x1xf32> to vector<8x8xf32>
    %34 = arith.subf %30, %33 : vector<8x8xf32>
    %35 = math.exp %34 : vector<8x8xf32>
    %cst_22 = arith.constant dense<0.000000e+00> : vector<8xf32>
    %36 = vector.multi_reduction <add>, %35, %cst_22 [1] : vector<8x8xf32> to vector<8xf32>
    %37 = vector.shape_cast %36 : vector<8xf32> to vector<8x1xf32>
    %38 = tpu.reciprocal %37 {approx = true} : vector<8x1xf32> -> vector<8x1xf32>
    %39 = vector.broadcast %38 : vector<8x1xf32> to vector<8x8xf32>
    %40 = arith.mulf %35, %39 : vector<8x8xf32>
    %41 = vector.extract_strided_slice %16 {offsets = [0, 0], sizes = [8, 8], strides = [1, 1]} : vector<8x32xf32> to vector<8x8xf32>
    %cst_23 = arith.constant dense<0.000000e+00> : vector<8x8xf32>
    %42 = tpu.matmul %40, %41, %cst_23 {dimension_numbers = #tpu.dot_dimension_numbers<[1], [0], [0], [1], [0, 0, 1, 1], [], []>} : vector<8x8xf32>, vector<8x8xf32>, vector<8x8xf32> -> vector<8x8xf32>
    %c0_24 = arith.constant 0 : index
    %c0_25 = arith.constant 0 : index
    %43 = vector.load %arg8[%c0_24, %c0_25] : memref<32x32xf32, #tpu.memory_space<vmem>>, vector<8x32xf32>
    %cst_26 = arith.constant dense<0.000000e+00> : vector<8x32xf32>
    %44 = tpu.matmul %42, %43, %cst_26 {dimension_numbers = #tpu.dot_dimension_numbers<[1], [0], [0], [1], [0, 0, 1, 1], [], []>} : vector<8x8xf32>, vector<8x32xf32>, vector<8x32xf32> -> vector<8x32xf32>
    %45 = arith.addf %23, %44 : vector<8x32xf32>
    %46 = vector.extract_strided_slice %6 {offsets = [0, 8], sizes = [8, 8], strides = [1, 1]} : vector<8x32xf32> to vector<8x8xf32>
    %cst_27 = arith.constant 0.353553385 : f32
    %47 = vector.broadcast %cst_27 : f32 to vector<8x8xf32>
    %48 = arith.mulf %46, %47 : vector<8x8xf32>
    %49 = vector.extract_strided_slice %11 {offsets = [0, 8], sizes = [8, 8], strides = [1, 1]} : vector<8x32xf32> to vector<8x8xf32>
    %50 = tpu.transpose %49, [1, 0] : vector<8x8xf32> -> vector<8x8xf32>
    %cst_28 = arith.constant dense<0.000000e+00> : vector<8x8xf32>
    %51 = tpu.matmul %48, %50, %cst_28 {dimension_numbers = #tpu.dot_dimension_numbers<[1], [0], [0], [1], [0, 0, 1, 1], [], []>} : vector<8x8xf32>, vector<8x8xf32>, vector<8x8xf32> -> vector<8x8xf32>
    %52 = arith.addf %51, %22 : vector<8x8xf32>
    %cst_29 = arith.constant dense<0xFF800000> : vector<8xf32>
    %53 = vector.multi_reduction <maximumf>, %52, %cst_29 [1] : vector<8x8xf32> to vector<8xf32>
    %54 = vector.shape_cast %53 : vector<8xf32> to vector<8x1xf32>
    %55 = vector.broadcast %54 : vector<8x1xf32> to vector<8x8xf32>
    %56 = arith.subf %52, %55 : vector<8x8xf32>
    %57 = math.exp %56 : vector<8x8xf32>
    %cst_30 = arith.constant dense<0.000000e+00> : vector<8xf32>
    %58 = vector.multi_reduction <add>, %57, %cst_30 [1] : vector<8x8xf32> to vector<8xf32>
    %59 = vector.shape_cast %58 : vector<8xf32> to vector<8x1xf32>
    %60 = tpu.reciprocal %59 {approx = true} : vector<8x1xf32> -> vector<8x1xf32>
    %61 = vector.broadcast %60 : vector<8x1xf32> to vector<8x8xf32>
    %62 = arith.mulf %57, %61 : vector<8x8xf32>
    %63 = vector.extract_strided_slice %16 {offsets = [0, 8], sizes = [8, 8], strides = [1, 1]} : vector<8x32xf32> to vector<8x8xf32>
    %cst_31 = arith.constant dense<0.000000e+00> : vector<8x8xf32>
    %64 = tpu.matmul %62, %63, %cst_31 {dimension_numbers = #tpu.dot_dimension_numbers<[1], [0], [0], [1], [0, 0, 1, 1], [], []>} : vector<8x8xf32>, vector<8x8xf32>, vector<8x8xf32> -> vector<8x8xf32>
    %c8 = arith.constant 8 : index
    %c0_32 = arith.constant 0 : index
    %65 = vector.load %arg8[%c8, %c0_32] : memref<32x32xf32, #tpu.memory_space<vmem>>, vector<8x32xf32>
    %cst_33 = arith.constant dense<0.000000e+00> : vector<8x32xf32>
    %66 = tpu.matmul %64, %65, %cst_33 {dimension_numbers = #tpu.dot_dimension_numbers<[1], [0], [0], [1], [0, 0, 1, 1], [], []>} : vector<8x8xf32>, vector<8x32xf32>, vector<8x32xf32> -> vector<8x32xf32>
    %67 = arith.addf %45, %66 : vector<8x32xf32>
    %68 = vector.extract_strided_slice %6 {offsets = [0, 16], sizes = [8, 8], strides = [1, 1]} : vector<8x32xf32> to vector<8x8xf32>
    %cst_34 = arith.constant 0.353553385 : f32
    %69 = vector.broadcast %cst_34 : f32 to vector<8x8xf32>
    %70 = arith.mulf %68, %69 : vector<8x8xf32>
    %71 = vector.extract_strided_slice %11 {offsets = [0, 16], sizes = [8, 8], strides = [1, 1]} : vector<8x32xf32> to vector<8x8xf32>
    %72 = tpu.transpose %71, [1, 0] : vector<8x8xf32> -> vector<8x8xf32>
    %cst_35 = arith.constant dense<0.000000e+00> : vector<8x8xf32>
    %73 = tpu.matmul %70, %72, %cst_35 {dimension_numbers = #tpu.dot_dimension_numbers<[1], [0], [0], [1], [0, 0, 1, 1], [], []>} : vector<8x8xf32>, vector<8x8xf32>, vector<8x8xf32> -> vector<8x8xf32>
    %74 = arith.addf %73, %22 : vector<8x8xf32>
    %cst_36 = arith.constant dense<0xFF800000> : vector<8xf32>
    %75 = vector.multi_reduction <maximumf>, %74, %cst_36 [1] : vector<8x8xf32> to vector<8xf32>
    %76 = vector.shape_cast %75 : vector<8xf32> to vector<8x1xf32>
    %77 = vector.broadcast %76 : vector<8x1xf32> to vector<8x8xf32>
    %78 = arith.subf %74, %77 : vector<8x8xf32>
    %79 = math.exp %78 : vector<8x8xf32>
    %cst_37 = arith.constant dense<0.000000e+00> : vector<8xf32>
    %80 = vector.multi_reduction <add>, %79, %cst_37 [1] : vector<8x8xf32> to vector<8xf32>
    %81 = vector.shape_cast %80 : vector<8xf32> to vector<8x1xf32>
    %82 = tpu.reciprocal %81 {approx = true} : vector<8x1xf32> -> vector<8x1xf32>
    %83 = vector.broadcast %82 : vector<8x1xf32> to vector<8x8xf32>
    %84 = arith.mulf %79, %83 : vector<8x8xf32>
    %85 = vector.extract_strided_slice %16 {offsets = [0, 16], sizes = [8, 8], strides = [1, 1]} : vector<8x32xf32> to vector<8x8xf32>
    %cst_38 = arith.constant dense<0.000000e+00> : vector<8x8xf32>
    %86 = tpu.matmul %84, %85, %cst_38 {dimension_numbers = #tpu.dot_dimension_numbers<[1], [0], [0], [1], [0, 0, 1, 1], [], []>} : vector<8x8xf32>, vector<8x8xf32>, vector<8x8xf32> -> vector<8x8xf32>
    %c16 = arith.constant 16 : index
    %c0_39 = arith.constant 0 : index
    %87 = vector.load %arg8[%c16, %c0_39] : memref<32x32xf32, #tpu.memory_space<vmem>>, vector<8x32xf32>
    %cst_40 = arith.constant dense<0.000000e+00> : vector<8x32xf32>
    %88 = tpu.matmul %86, %87, %cst_40 {dimension_numbers = #tpu.dot_dimension_numbers<[1], [0], [0], [1], [0, 0, 1, 1], [], []>} : vector<8x8xf32>, vector<8x32xf32>, vector<8x32xf32> -> vector<8x32xf32>
    %89 = arith.addf %67, %88 : vector<8x32xf32>
    %90 = vector.extract_strided_slice %6 {offsets = [0, 24], sizes = [8, 8], strides = [1, 1]} : vector<8x32xf32> to vector<8x8xf32>
    %cst_41 = arith.constant 0.353553385 : f32
    %91 = vector.broadcast %cst_41 : f32 to vector<8x8xf32>
    %92 = arith.mulf %90, %91 : vector<8x8xf32>
    %93 = vector.extract_strided_slice %11 {offsets = [0, 24], sizes = [8, 8], strides = [1, 1]} : vector<8x32xf32> to vector<8x8xf32>
    %94 = tpu.transpose %93, [1, 0] : vector<8x8xf32> -> vector<8x8xf32>
    %cst_42 = arith.constant dense<0.000000e+00> : vector<8x8xf32>
    %95 = tpu.matmul %92, %94, %cst_42 {dimension_numbers = #tpu.dot_dimension_numbers<[1], [0], [0], [1], [0, 0, 1, 1], [], []>} : vector<8x8xf32>, vector<8x8xf32>, vector<8x8xf32> -> vector<8x8xf32>
    %96 = arith.addf %95, %22 : vector<8x8xf32>
    %cst_43 = arith.constant dense<0xFF800000> : vector<8xf32>
    %97 = vector.multi_reduction <maximumf>, %96, %cst_43 [1] : vector<8x8xf32> to vector<8xf32>
    %98 = vector.shape_cast %97 : vector<8xf32> to vector<8x1xf32>
    %99 = vector.broadcast %98 : vector<8x1xf32> to vector<8x8xf32>
    %100 = arith.subf %96, %99 : vector<8x8xf32>
    %101 = math.exp %100 : vector<8x8xf32>
    %cst_44 = arith.constant dense<0.000000e+00> : vector<8xf32>
    %102 = vector.multi_reduction <add>, %101, %cst_44 [1] : vector<8x8xf32> to vector<8xf32>
    %103 = vector.shape_cast %102 : vector<8xf32> to vector<8x1xf32>
    %104 = tpu.reciprocal %103 {approx = true} : vector<8x1xf32> -> vector<8x1xf32>
    %105 = vector.broadcast %104 : vector<8x1xf32> to vector<8x8xf32>
    %106 = arith.mulf %101, %105 : vector<8x8xf32>
    %107 = vector.extract_strided_slice %16 {offsets = [0, 24], sizes = [8, 8], strides = [1, 1]} : vector<8x32xf32> to vector<8x8xf32>
    %cst_45 = arith.constant dense<0.000000e+00> : vector<8x8xf32>
    %108 = tpu.matmul %106, %107, %cst_45 {dimension_numbers = #tpu.dot_dimension_numbers<[1], [0], [0], [1], [0, 0, 1, 1], [], []>} : vector<8x8xf32>, vector<8x8xf32>, vector<8x8xf32> -> vector<8x8xf32>
    %c24 = arith.constant 24 : index
    %c0_46 = arith.constant 0 : index
    %109 = vector.load %arg8[%c24, %c0_46] : memref<32x32xf32, #tpu.memory_space<vmem>>, vector<8x32xf32>
    %cst_47 = arith.constant dense<0.000000e+00> : vector<8x32xf32>
    %110 = tpu.matmul %108, %109, %cst_47 {dimension_numbers = #tpu.dot_dimension_numbers<[1], [0], [0], [1], [0, 0, 1, 1], [], []>} : vector<8x8xf32>, vector<8x32xf32>, vector<8x32xf32> -> vector<8x32xf32>
    %111 = arith.addf %89, %110 : vector<8x32xf32>
    %112 = arith.addf %1, %111 : vector<8x32xf32>
    %c0_48 = arith.constant 0 : index
    %c0_49 = arith.constant 0 : index
    %113 = vector.load %arg9[%c0_48, %c0_49] : memref<1x32xf32, #tpu.memory_space<vmem>>, vector<1x32xf32>
    %114 = vector.broadcast %113 : vector<1x32xf32> to vector<8x32xf32>
    %115 = arith.addf %112, %114 : vector<8x32xf32>
    %c0_50 = arith.constant 0 : index
    %c0_51 = arith.constant 0 : index
    %116 = vector.load %arg10[%c0_50, %c0_51] : memref<1x32xf32, #tpu.memory_space<vmem>>, vector<1x32xf32>
    %c0_52 = arith.constant 0 : index
    %c0_53 = arith.constant 0 : index
    %117 = vector.load %arg11[%c0_52, %c0_53] : memref<1x32xf32, #tpu.memory_space<vmem>>, vector<1x32xf32>
    %cst_54 = arith.constant dense<0.000000e+00> : vector<8xf32>
    %118 = vector.multi_reduction <add>, %115, %cst_54 [1] : vector<8x32xf32> to vector<8xf32>
    %119 = vector.shape_cast %118 : vector<8xf32> to vector<8x1xf32>
    %cst_55 = arith.constant 3.200000e+01 : f32
    %120 = vector.broadcast %cst_55 : f32 to vector<8x1xf32>
    %121 = arith.divf %119, %120 : vector<8x1xf32>
    %122 = vector.broadcast %121 : vector<8x1xf32> to vector<8x32xf32>
    %123 = arith.subf %115, %122 : vector<8x32xf32>
    %124 = arith.mulf %123, %123 : vector<8x32xf32>
    %cst_56 = arith.constant dense<0.000000e+00> : vector<8xf32>
    %125 = vector.multi_reduction <add>, %124, %cst_56 [1] : vector<8x32xf32> to vector<8xf32>
    %126 = vector.shape_cast %125 : vector<8xf32> to vector<8x1xf32>
    %cst_57 = arith.constant 3.200000e+01 : f32
    %127 = vector.broadcast %cst_57 : f32 to vector<8x1xf32>
    %128 = arith.divf %126, %127 : vector<8x1xf32>
    %cst_58 = arith.constant 9.99999974E-6 : f32
    %129 = vector.broadcast %cst_58 : f32 to vector<8x1xf32>
    %130 = arith.addf %128, %129 : vector<8x1xf32>
    %131 = math.rsqrt %130 : vector<8x1xf32>
    %132 = vector.broadcast %131 : vector<8x1xf32> to vector<8x32xf32>
    %133 = arith.mulf %123, %132 : vector<8x32xf32>
    %134 = vector.broadcast %116 : vector<1x32xf32> to vector<8x32xf32>
    %135 = arith.mulf %133, %134 : vector<8x32xf32>
    %136 = vector.broadcast %117 : vector<1x32xf32> to vector<8x32xf32>
    %137 = arith.addf %135, %136 : vector<8x32xf32>
    %c0_59 = arith.constant 0 : index
    %c0_60 = arith.constant 0 : index
    %138 = vector.load %arg12[%c0_59, %c0_60] : memref<32x128xf32, #tpu.memory_space<vmem>>, vector<32x128xf32>
    %cst_61 = arith.constant dense<0.000000e+00> : vector<8x128xf32>
    %139 = tpu.matmul %137, %138, %cst_61 {dimension_numbers = #tpu.dot_dimension_numbers<[1], [0], [0], [1], [0, 0, 1, 1], [], []>} : vector<8x32xf32>, vector<32x128xf32>, vector<8x128xf32> -> vector<8x128xf32>
    %c0_62 = arith.constant 0 : index
    %c0_63 = arith.constant 0 : index
    %140 = vector.load %arg13[%c0_62, %c0_63] : memref<1x128xf32, #tpu.memory_space<vmem>>, vector<1x128xf32>
    %141 = vector.broadcast %140 : vector<1x128xf32> to vector<8x128xf32>
    %142 = arith.addf %139, %141 : vector<8x128xf32>
    %cst_64 = arith.constant 5.000000e-01 : f32
    %143 = vector.broadcast %cst_64 : f32 to vector<8x128xf32>
    %144 = arith.mulf %143, %142 : vector<8x128xf32>
    %cst_65 = arith.constant 0.707106769 : f32
    %145 = vector.broadcast %cst_65 : f32 to vector<8x128xf32>
    %146 = arith.mulf %142, %145 : vector<8x128xf32>
    %147 = math.absf %146 : vector<8x128xf32>
    %cst_66 = arith.constant 0.327591091 : f32
    %148 = vector.broadcast %cst_66 : f32 to vector<8x128xf32>
    %149 = arith.mulf %148, %147 : vector<8x128xf32>
    %cst_67 = arith.constant 1.000000e+00 : f32
    %150 = vector.broadcast %cst_67 : f32 to vector<8x128xf32>
    %151 = arith.addf %150, %149 : vector<8x128xf32>
    %152 = tpu.reciprocal %151 {approx = true} : vector<8x128xf32> -> vector<8x128xf32>
    %cst_68 = arith.constant 1.06140542 : f32
    %153 = vector.broadcast %cst_68 : f32 to vector<8x128xf32>
    %154 = arith.mulf %153, %152 : vector<8x128xf32>
    %cst_69 = arith.constant -1.45315206 : f32
    %155 = vector.broadcast %cst_69 : f32 to vector<8x128xf32>
    %156 = arith.addf %154, %155 : vector<8x128xf32>
    %157 = arith.mulf %156, %152 : vector<8x128xf32>
    %cst_70 = arith.constant 1.42141378 : f32
    %158 = vector.broadcast %cst_70 : f32 to vector<8x128xf32>
    %159 = arith.addf %157, %158 : vector<8x128xf32>
    %160 = arith.mulf %159, %152 : vector<8x128xf32>
    %cst_71 = arith.constant -0.284496725 : f32
    %161 = vector.broadcast %cst_71 : f32 to vector<8x128xf32>
    %162 = arith.addf %160, %161 : vector<8x128xf32>
    %163 = arith.mulf %162, %152 : vector<8x128xf32>
    %cst_72 = arith.constant 0.254829586 : f32
    %164 = vector.broadcast %cst_72 : f32 to vector<8x128xf32>
    %165 = arith.addf %163, %164 : vector<8x128xf32>
    %166 = arith.mulf %165, %152 : vector<8x128xf32>
    %cst_73 = arith.constant 0.000000e+00 : f32
    %167 = vector.broadcast %cst_73 : f32 to vector<8x128xf32>
    %168 = arith.subf %167, %147 : vector<8x128xf32>
    %169 = arith.mulf %168, %147 : vector<8x128xf32>
    %170 = math.exp %169 : vector<8x128xf32>
    %171 = arith.mulf %166, %170 : vector<8x128xf32>
    %cst_74 = arith.constant 1.000000e+00 : f32
    %172 = vector.broadcast %cst_74 : f32 to vector<8x128xf32>
    %173 = arith.subf %172, %171 : vector<8x128xf32>
    %cst_75 = arith.constant 0.000000e+00 : f32
    %174 = vector.broadcast %cst_75 : f32 to vector<8x128xf32>
    %175 = arith.cmpf oge, %146, %174 : vector<8x128xf32>
    %cst_76 = arith.constant 0.000000e+00 : f32
    %176 = vector.broadcast %cst_76 : f32 to vector<8x128xf32>
    %177 = arith.subf %176, %173 : vector<8x128xf32>
    %178 = arith.select %175, %173, %177 : vector<8x128xi1>, vector<8x128xf32>
    %cst_77 = arith.constant 1.000000e+00 : f32
    %179 = vector.broadcast %cst_77 : f32 to vector<8x128xf32>
    %180 = arith.addf %179, %178 : vector<8x128xf32>
    %181 = arith.mulf %144, %180 : vector<8x128xf32>
    %c0_78 = arith.constant 0 : index
    %c0_79 = arith.constant 0 : index
    %182 = vector.load %arg14[%c0_78, %c0_79] : memref<128x32xf32, #tpu.memory_space<vmem>>, vector<128x32xf32>
    %cst_80 = arith.constant dense<0.000000e+00> : vector<8x32xf32>
    %183 = tpu.matmul %181, %182, %cst_80 {dimension_numbers = #tpu.dot_dimension_numbers<[1], [0], [0], [1], [0, 0, 1, 1], [], []>} : vector<8x128xf32>, vector<128x32xf32>, vector<8x32xf32> -> vector<8x32xf32>
    %c0_81 = arith.constant 0 : index
    %c0_82 = arith.constant 0 : index
    %184 = vector.load %arg15[%c0_81, %c0_82] : memref<1x32xf32, #tpu.memory_space<vmem>>, vector<1x32xf32>
    %185 = vector.broadcast %184 : vector<1x32xf32> to vector<8x32xf32>
    %186 = arith.addf %183, %185 : vector<8x32xf32>
    %187 = arith.addf %137, %186 : vector<8x32xf32>
    %c0_83 = arith.constant 0 : index
    %c0_84 = arith.constant 0 : index
    %188 = vector.load %arg16[%c0_83, %c0_84] : memref<1x32xf32, #tpu.memory_space<vmem>>, vector<1x32xf32>
    %c0_85 = arith.constant 0 : index
    %c0_86 = arith.constant 0 : index
    %189 = vector.load %arg17[%c0_85, %c0_86] : memref<1x32xf32, #tpu.memory_space<vmem>>, vector<1x32xf32>
    %cst_87 = arith.constant dense<0.000000e+00> : vector<8xf32>
    %190 = vector.multi_reduction <add>, %187, %cst_87 [1] : vector<8x32xf32> to vector<8xf32>
    %191 = vector.shape_cast %190 : vector<8xf32> to vector<8x1xf32>
    %cst_88 = arith.constant 3.200000e+01 : f32
    %192 = vector.broadcast %cst_88 : f32 to vector<8x1xf32>
    %193 = arith.divf %191, %192 : vector<8x1xf32>
    %194 = vector.broadcast %193 : vector<8x1xf32> to vector<8x32xf32>
    %195 = arith.subf %187, %194 : vector<8x32xf32>
    %196 = arith.mulf %195, %195 : vector<8x32xf32>
    %cst_89 = arith.constant dense<0.000000e+00> : vector<8xf32>
    %197 = vector.multi_reduction <add>, %196, %cst_89 [1] : vector<8x32xf32> to vector<8xf32>
    %198 = vector.shape_cast %197 : vector<8xf32> to vector<8x1xf32>
    %cst_90 = arith.constant 3.200000e+01 : f32
    %199 = vector.broadcast %cst_90 : f32 to vector<8x1xf32>
    %200 = arith.divf %198, %199 : vector<8x1xf32>
    %cst_91 = arith.constant 9.99999974E-6 : f32
    %201 = vector.broadcast %cst_91 : f32 to vector<8x1xf32>
    %202 = arith.addf %200, %201 : vector<8x1xf32>
    %203 = math.rsqrt %202 : vector<8x1xf32>
    %204 = vector.broadcast %203 : vector<8x1xf32> to vector<8x32xf32>
    %205 = arith.mulf %195, %204 : vector<8x32xf32>
    %206 = vector.broadcast %188 : vector<1x32xf32> to vector<8x32xf32>
    %207 = arith.mulf %205, %206 : vector<8x32xf32>
    %208 = vector.broadcast %189 : vector<1x32xf32> to vector<8x32xf32>
    %209 = arith.addf %207, %208 : vector<8x32xf32>
    %c0_92 = arith.constant 0 : index
    %c0_93 = arith.constant 0 : index
    %c0_94 = arith.constant 0 : index
    %210 = vector.load %arg18[%c0_92, %c0_93, %c0_94] : memref<1x8x32xf32, #tpu.memory_space<vmem>>, vector<1x8x32xf32>
    %211 = vector.shape_cast %210 : vector<1x8x32xf32> to vector<8x32xf32>
    %212 = vector.shape_cast %209 : vector<8x32xf32> to vector<1x8x32xf32>
    tpu.vector_store %arg18[%c0_92, %c0_93, %c0_94], %212 {strides = array<i32>} : memref<1x8x32xf32, #tpu.memory_space<vmem>>, vector<1x8x32xf32>,
    return
  }
  func.func @transform_0(%arg0: i32) -> (i32, i32, i32) {
    %c0_i32 = arith.constant 0 : i32
    %c0_i32_0 = arith.constant 0 : i32
    %c0_i32_1 = arith.constant 0 : i32
    return %arg0, %c0_i32, %c0_i32_0 : i32, i32, i32
  }
  func.func @transform_1(%arg0: i32) -> (i32, i32) {
    %c0_i32 = arith.constant 0 : i32
    %c0_i32_0 = arith.constant 0 : i32
    %c0_i32_1 = arith.constant 0 : i32
    return %c0_i32, %c0_i32_0 : i32, i32
  }
  func.func @transform_2(%arg0: i32) -> (i32, i32) {
    %c0_i32 = arith.constant 0 : i32
    %c0_i32_0 = arith.constant 0 : i32
    %c0_i32_1 = arith.constant 0 : i32
    return %c0_i32, %c0_i32_0 : i32, i32
  }
  func.func @transform_3(%arg0: i32) -> (i32, i32) {
    %c0_i32 = arith.constant 0 : i32
    %c0_i32_0 = arith.constant 0 : i32
    %c0_i32_1 = arith.constant 0 : i32
    return %c0_i32, %c0_i32_0 : i32, i32
  }
  func.func @transform_4(%arg0: i32) -> (i32, i32) {
    %c0_i32 = arith.constant 0 : i32
    %c0_i32_0 = arith.constant 0 : i32
    %c0_i32_1 = arith.constant 0 : i32
    return %c0_i32, %c0_i32_0 : i32, i32
  }
  func.func @transform_5(%arg0: i32) -> (i32, i32) {
    %c0_i32 = arith.constant 0 : i32
    %c0_i32_0 = arith.constant 0 : i32
    %c0_i32_1 = arith.constant 0 : i32
    return %c0_i32, %c0_i32_0 : i32, i32
  }
  func.func @transform_6(%arg0: i32) -> (i32, i32) {
    %c0_i32 = arith.constant 0 : i32
    %c0_i32_0 = arith.constant 0 : i32
    %c0_i32_1 = arith.constant 0 : i32
    return %c0_i32, %c0_i32_0 : i32, i32
  }
  func.func @transform_7(%arg0: i32) -> (i32, i32) {
    %c0_i32 = arith.constant 0 : i32
    %c0_i32_0 = arith.constant 0 : i32
    %c0_i32_1 = arith.constant 0 : i32
    return %c0_i32, %c0_i32_0 : i32, i32
  }
  func.func @transform_8(%arg0: i32) -> (i32, i32) {
    %c0_i32 = arith.constant 0 : i32
    %c0_i32_0 = arith.constant 0 : i32
    %c0_i32_1 = arith.constant 0 : i32
    return %c0_i32, %c0_i32_0 : i32, i32
  }
  func.func @transform_9(%arg0: i32) -> (i32, i32) {
    %c0_i32 = arith.constant 0 : i32
    %c0_i32_0 = arith.constant 0 : i32
    %c0_i32_1 = arith.constant 0 : i32
    return %c0_i32, %c0_i32_0 : i32, i32
  }
  func.func @transform_10(%arg0: i32) -> (i32, i32) {
    %c0_i32 = arith.constant 0 : i32
    %c0_i32_0 = arith.constant 0 : i32
    %c0_i32_1 = arith.constant 0 : i32
    return %c0_i32, %c0_i32_0 : i32, i32
  }
  func.func @transform_11(%arg0: i32) -> (i32, i32) {
    %c0_i32 = arith.constant 0 : i32
    %c0_i32_0 = arith.constant 0 : i32
    %c0_i32_1 = arith.constant 0 : i32
    return %c0_i32, %c0_i32_0 : i32, i32
  }
  func.func @transform_12(%arg0: i32) -> (i32, i32) {
    %c0_i32 = arith.constant 0 : i32
    %c0_i32_0 = arith.constant 0 : i32
    %c0_i32_1 = arith.constant 0 : i32
    return %c0_i32, %c0_i32_0 : i32, i32
  }
  func.func @transform_13(%arg0: i32) -> (i32, i32) {
    %c0_i32 = arith.constant 0 : i32
    %c0_i32_0 = arith.constant 0 : i32
    %c0_i32_1 = arith.constant 0 : i32
    return %c0_i32, %c0_i32_0 : i32, i32
  }
  func.func @transform_14(%arg0: i32) -> (i32, i32) {
    %c0_i32 = arith.constant 0 : i32
    %c0_i32_0 = arith.constant 0 : i32
    %c0_i32_1 = arith.constant 0 : i32
    return %c0_i32, %c0_i32_0 : i32, i32
  }
  func.func @transform_15(%arg0: i32) -> (i32, i32) {
    %c0_i32 = arith.constant 0 : i32
    %c0_i32_0 = arith.constant 0 : i32
    %c0_i32_1 = arith.constant 0 : i32
    return %c0_i32, %c0_i32_0 : i32, i32
  }
  func.func @transform_16(%arg0: i32) -> (i32, i32) {
    %c0_i32 = arith.constant 0 : i32
    %c0_i32_0 = arith.constant 0 : i32
    %c0_i32_1 = arith.constant 0 : i32
    return %c0_i32, %c0_i32_0 : i32, i32
  }
  func.func @transform_17(%arg0: i32) -> (i32, i32, i32) {
    %c0_i32 = arith.constant 0 : i32
    %c0_i32_0 = arith.constant 0 : i32
    %c0_i32_1 = arith.constant 0 : i32
    return %arg0, %c0_i32, %c0_i32_0 : i32, i32, i32
  }
}

</mosaic_0001>

<llo_original>
// kernel: gpt2_forward.5
$region0: #{gpt2_forward.5}
  #allocation0 [shape = 'u32[]', space=smem, size = 0x4, offset = 0x4, fixed_abs, tag = 'smem constant byte address 0x4 - core index']
  #allocation1 [shape = 'u32[144,128]{1,0:T(1,128)}', space=vmem, size = 0x12000, scoped, tag = 'internal scratch']
  %s0 = inlined_call_operand.vmem [shape: f32[16,32], index: 0, kind: input, shape index: {}]
  %s1 = inlined_call_operand.vmem [shape: f32[1,32], index: 1, kind: input, shape index: {}]
  %s2 = inlined_call_operand.vmem [shape: f32[1,32], index: 2, kind: input, shape index: {}]
  %s3 = inlined_call_operand.vmem [shape: f32[32,64], index: 3, kind: input, shape index: {}]
  %s4 = inlined_call_operand.vmem [shape: f32[1,64], index: 4, kind: input, shape index: {}]
  %s5 = inlined_call_operand.vmem [shape: f32[16,64], index: 5, kind: output, shape index: {}]
  %s6 = sld [smem:[#allocation0]]
  $region30: #{gpt2_forward.5} parent=0
    _
  %s8 = ssub.s32 1, %s6
  %s9 = scalar_select 0, %s8, %s6
  // Predicated region
  $region2: #{gpt2_forward.5} parent=0 // pred_check
    _
  $region3: #{gpt2_forward.5} parent=0 // pred_check_branch
    %11 = sbr.rel (0) target = $region5
  $region4: #{gpt2_forward.5} parent=0 // pred_region
    _
  $region5: #{gpt2_forward.5} parent=0 // pred_fallthru
    _
  // Predicated region
  $region6: #{gpt2_forward.5} parent=0 // pred_check
    _
  $region7: #{gpt2_forward.5} parent=0 // pred_check_branch
    %13 = sbr.rel (0) target = $region9
  $region8: #{gpt2_forward.5} parent=0 // pred_region
    _
  $region9: #{gpt2_forward.5} parent=0 // pred_fallthru
    _
  // Predicated region
  $region10: #{gpt2_forward.5} parent=0 // pred_check
    _
  $region11: #{gpt2_forward.5} parent=0 // pred_check_branch
    %15 = sbr.rel (0) target = $region13
  $region12: #{gpt2_forward.5} parent=0 // pred_region
    _
  $region13: #{gpt2_forward.5} parent=0 // pred_fallthru
    _
  // Predicated region
  $region14: #{gpt2_forward.5} parent=0 // pred_check
    _
  $region15: #{gpt2_forward.5} parent=0 // pred_check_branch
    %17 = sbr.rel (0) target = $region17
  $region16: #{gpt2_forward.5} parent=0 // pred_region
    _
  $region17: #{gpt2_forward.5} parent=0 // pred_fallthru
    _
  // Predicated region
  $region18: #{gpt2_forward.5} parent=0 // pred_check
    _
  $region19: #{gpt2_forward.5} parent=0 // pred_check_branch
    %19 = sbr.rel (0) target = $region21
  $region20: #{gpt2_forward.5} parent=0 // pred_region
    _
  $region21: #{gpt2_forward.5} parent=0 // pred_fallthru
    _
  %v20 = vld [vmem:[%s0] sm:$0xff]
  %v21 = vld [vmem:[%s0 + $0x8] sm:$0xff]
  %v22 = vld [vmem:[%s1] sm:$0x1]
  %v23 = vld [vmem:[%s2] sm:$0x1]
  %vm24 = vcmask 261120
  %v25 = vsel %vm24, %v20, 0.0
  %26 = vadd.xlane.f32.xlu0 %v25
  %v27 = vpop.xlane.xlu0 %26
  %v28 = vsel %vm24, %v21, 0.0
  %29 = vadd.xlane.f32.xlu0 %v28
  %v30 = vpop.xlane.xlu0 %29
  %v31 = vrcp.pop 32.0
  %v32 = vmul.f32 %v27, %v31
  %v33 = vmul.f32 %v30, %v31
  %v34 = vsub.f32 %v20, %v32
  %v35 = vsub.f32 %v21, %v33
  %v36 = vmul.f32 %v34, %v34
  %v37 = vmul.f32 %v35, %v35
  %v38 = vsel %vm24, %v36, 0.0
  %39 = vadd.xlane.f32.xlu0 %v38
  %v40 = vpop.xlane.xlu0 %39
  %v41 = vsel %vm24, %v37, 0.0
  %42 = vadd.xlane.f32.xlu0 %v41
  %v43 = vpop.xlane.xlu0 %42
  %v44 = vmul.f32 %v40, %v31
  %v45 = vmul.f32 %v43, %v31
  %v46 = vadd.f32 %v44, 1e-05
  %v47 = vadd.f32 %v45, 1e-05
  %v48 = vrsqrt.pop %v46
  %v49 = vrsqrt.pop %v47
  %v50 = vmul.f32 %v34, %v48
  %v51 = vmul.f32 %v35, %v49
  %v53 = vlaneseq
  %v54 = vshrl.u32 %v53, 7
  %v55 = vsub.s32 0, %v54
  %v56 = vrot.slane %v22, %v55
  %v58 = vmul.f32 %v50, %v56
  %v59 = vmul.f32 %v51, %v56
  %v61 = vlaneseq
  %v62 = vshrl.u32 %v61, 7
  %v63 = vsub.s32 0, %v62
  %v64 = vrot.slane %v23, %v63
  %v66 = vadd.f32 %v58, %v64
  %v67 = vadd.f32 %v59, %v64
  %v68 = vld [vmem:[%s3] sm:$0xff]
  %v69 = vld [vmem:[%s3 + $0x8] sm:$0xff]
  %v70 = vld [vmem:[%s3 + $0x10] sm:$0xff]
  %v71 = vld [vmem:[%s3 + $0x18] sm:$0xff]
  %v72 = vld [vmem:[%s4] sm:$0x1]
  %v74 = vlaneseq
  %v75 = vshrl.u32 %v74, 7
  %v76 = vsub.s32 0, %v75
  %v77 = vrot.slane %v72, %v76
  %v80 = vsel %vm24, %v66, 0
  %v83 = vsel %vm24, %v67, 0
  %85 = vmatprep.subr.mxu0 0.0
  %86 = vmatpush1.msra.mxu0 0.0
  %87 = vmatprep.subr.mxu0 0.0
  %88 = vmatpush1.msra.mxu0 0.0
  %89 = vmatprep.subr.mxu0 0.0
  %90 = vmatpush1.msra.mxu0 0.0
  %91 = vmatprep.subr.mxu0 0.0
  %92 = vmatpush1.msra.mxu0 0.0
  %93 = vmatprep.subr.mxu0 0.0
  %94 = vmatpush1.msra.mxu0 0.0
  %95 = vmatprep.subr.mxu0 0.0
  %96 = vmatpush1.msra.mxu0 0.0
  %97 = vmatprep.subr.mxu0 0.0
  %98 = vmatpush1.msra.mxu0 0.0
  %99 = vmatprep.subr.mxu0 0.0
  %100 = vmatpush1.msra.mxu0 0.0
  %101 = vmatprep.subr.mxu0 0.0
  %102 = vmatpush1.msra.mxu0 0.0
  %103 = vmatprep.subr.mxu0 0.0
  %104 = vmatpush1.msra.mxu0 0.0
  %105 = vmatprep.subr.mxu0 0.0
  %106 = vmatpush1.msra.mxu0 0.0
  %107 = vmatprep.subr.mxu0 0.0
  %108 = vmatpush1.msra.mxu0 0.0
  %109 = vmatprep.subr.mxu0 0.0
  %110 = vmatpush1.msra.mxu0 %v71
  %111 = vmatprep.subr.mxu0 0.0
  %112 = vmatpush1.msra.mxu0 %v70
  %113 = vmatprep.subr.mxu0 0.0
  %114 = vmatpush1.msra.mxu0 %v69
  %115 = vmatprep.subr.mxu0 0.0
  %116 = vmatpush1.msra.mxu0 %v68
  %117 = vmatprep.subr.mxu0 0.0
  %118 = vmatpush2.msra.mxu0 0.0
  %119 = vmatprep.subr.mxu0 0.0
  %120 = vmatpush2.msra.mxu0 0.0
  %121 = vmatprep.subr.mxu0 0.0
  %122 = vmatpush2.msra.mxu0 0.0
  %123 = vmatprep.subr.mxu0 0.0
  %124 = vmatpush2.msra.mxu0 0.0
  %125 = vmatprep.subr.mxu0 0.0
  %126 = vmatpush2.msra.mxu0 0.0
  %127 = vmatprep.subr.mxu0 0.0
  %128 = vmatpush2.msra.mxu0 0.0
  %129 = vmatprep.subr.mxu0 0.0
  %130 = vmatpush2.msra.mxu0 0.0
  %131 = vmatprep.subr.mxu0 0.0
  %132 = vmatpush2.msra.mxu0 0.0
  %133 = vmatprep.subr.mxu0 0.0
  %134 = vmatpush2.msra.mxu0 0.0
  %135 = vmatprep.subr.mxu0 0.0
  %136 = vmatpush2.msra.mxu0 0.0
  %137 = vmatprep.subr.mxu0 0.0
  %138 = vmatpush2.msra.mxu0 0.0
  %139 = vmatprep.subr.mxu0 0.0
  %140 = vmatpush2.msra.mxu0 0.0
  %141 = vmatprep.subr.mxu0 0.0
  %142 = vmatpush2.msra.mxu0 0.0
  %143 = vmatprep.subr.mxu0 0.0
  %144 = vmatpush2.msra.mxu0 0.0
  %145 = vmatprep.subr.mxu0 0.0
  %146 = vmatpush2.msra.mxu0 0.0
  %147 = vmatprep.subr.mxu0 0.0
  %148 = vmatpush2.msra.mxu0 0.0
  %149 = vmatprep.mubr.f32.mxu0 0.0
  %150 = vmatmul.mubr.f32.gmra.mxu0 %v80
  %v151 = vpop.f32.mrf.mxu0
  %v152 = vadd.f32 %v77, %v151
  %v153 = vpop.f32.mrf.mxu0
  %154 = vmatprep.mubr.f32.mxu0 0.0
  %155 = vmatmul.mubr.f32.gmra.mxu0 %v83
  %v156 = vpop.f32.mrf.mxu0
  %v157 = vadd.f32 %v77, %v156
  %v158 = vpop.f32.mrf.mxu0
  %159 = vdwg.mxu0
  %vm160 = vcmask 523264
  %161 = vst.msk [vmem:[%s5] sm:$0xff] %vm160, %v152
  %162 = vst.msk [vmem:[%s5 + $0x8] sm:$0xff] %vm160, %v157
  // Predicated region
  $region22: #{gpt2_forward.5} parent=0 // pred_check
    _
  $region23: #{gpt2_forward.5} parent=0 // pred_check_branch
    %164 = sbr.rel (0) target = $region25
  $region24: #{gpt2_forward.5} parent=0 // pred_region
    _
  $region25: #{gpt2_forward.5} parent=0 // pred_fallthru
    _
  // Predicated region
  $region26: #{gpt2_forward.5} parent=0 // pred_check
    _
  $region27: #{gpt2_forward.5} parent=0 // pred_check_branch
    %166 = sbr.rel (0) target = $region29
  $region28: #{gpt2_forward.5} parent=0 // pred_region
    _
  $region29: #{gpt2_forward.5} parent=0 // pred_fallthru
    _

// kernel: gpt2_forward.3
$region0: #{gpt2_forward.3}
  #allocation0 [shape = 'u32[]', space=smem, size = 0x4, offset = 0x4, fixed_abs, tag = 'smem constant byte address 0x4 - core index']
  #allocation1 [shape = 'u32[144,128]{1,0:T(1,128)}', space=vmem, size = 0x12000, scoped, tag = 'internal scratch']
  %s0 = inlined_call_operand.vmem [shape: f32[2,8,32], index: 0, kind: input, shape index: {}]
  %s1 = inlined_call_operand.vmem [shape: f32[32,32], index: 1, kind: input, shape index: {}]
  %s2 = inlined_call_operand.vmem [shape: f32[1,32], index: 2, kind: input, shape index: {}]
  %s3 = inlined_call_operand.vmem [shape: f32[32,32], index: 3, kind: input, shape index: {}]
  %s4 = inlined_call_operand.vmem [shape: f32[1,32], index: 4, kind: input, shape index: {}]
  %s5 = inlined_call_operand.vmem [shape: f32[32,32], index: 5, kind: input, shape index: {}]
  %s6 = inlined_call_operand.vmem [shape: f32[1,32], index: 6, kind: input, shape index: {}]
  %s7 = inlined_call_operand.vmem [shape: f32[32,32], index: 7, kind: input, shape index: {}]
  %s8 = inlined_call_operand.vmem [shape: f32[1,32], index: 8, kind: input, shape index: {}]
  %s9 = inlined_call_operand.vmem [shape: f32[1,32], index: 9, kind: input, shape index: {}]
  %s10 = inlined_call_operand.vmem [shape: f32[1,32], index: 10, kind: input, shape index: {}]
  %s11 = inlined_call_operand.vmem [shape: f32[32,128], index: 11, kind: input, shape index: {}]
  %s12 = inlined_call_operand.vmem [shape: f32[1,128], index: 12, kind: input, shape index: {}]
  %s13 = inlined_call_operand.vmem [shape: f32[128,32], index: 13, kind: input, shape index: {}]
  %s14 = inlined_call_operand.vmem [shape: f32[1,32], index: 14, kind: input, shape index: {}]
  %s15 = inlined_call_operand.vmem [shape: f32[1,32], index: 15, kind: input, shape index: {}]
  %s16 = inlined_call_operand.vmem [shape: f32[1,32], index: 16, kind: input, shape index: {}]
  %s17 = inlined_call_operand.vmem [shape: f32[2,8,32], index: 17, kind: output, shape index: {}]
  %s18 = sld [smem:[#allocation0]]
  $region101: #{gpt2_forward.3} parent=0
    _
  %s20 = ssub.s32 1, %s18
  %s21 = scalar_select 0, %s20, %s18
  loop: start=0, step=1, limit=4
  $region2: #{gpt2_forward.3} parent=0 // loop_pre_header
    _
  $region3: #{gpt2_forward.3} parent=0 // loop_header
    %s23 = sphi 0, %s27
    %p24 = scmp.ge.s32.totalorder %s23, 4
    %s33 = sphi 0, %s35
    %s36 = sphi 0, %s33
    %s37 = sphi 0, %s36
    %s53 = sphi 0, %s37
    %s57 = sphi 0, %s57
    %s59 = sphi 0, %s57
    %s60 = sphi 0, %s59
    %s74 = sphi 0, %s60
    %s78 = sphi 0, %s78
    %s80 = sphi 0, %s78
    %s81 = sphi 0, %s80
    %s95 = sphi 0, %s81
    %s99 = sphi 0, %s99
    %s101 = sphi 0, %s99
    %s102 = sphi 0, %s101
    %s116 = sphi 0, %s102
    %s120 = sphi 0, %s120
    %s122 = sphi 0, %s120
    %s123 = sphi 0, %s122
    %s137 = sphi 0, %s123
    %s141 = sphi 0, %s141
    %s143 = sphi 0, %s141
    %s144 = sphi 0, %s143
    %s158 = sphi 0, %s144
    %s162 = sphi 0, %s162
    %s164 = sphi 0, %s162
    %s165 = sphi 0, %s164
    %s179 = sphi 0, %s165
    %s183 = sphi 0, %s183
    %s185 = sphi 0, %s183
    %s186 = sphi 0, %s185
    %s200 = sphi 0, %s186
    %s204 = sphi 0, %s204
    %s206 = sphi 0, %s204
    %s207 = sphi 0, %s206
    %s221 = sphi 0, %s207
    %s225 = sphi 0, %s225
    %s227 = sphi 0, %s225
    %s228 = sphi 0, %s227
    %s242 = sphi 0, %s228
    %s246 = sphi 0, %s246
    %s248 = sphi 0, %s246
    %s249 = sphi 0, %s248
    %s263 = sphi 0, %s249
    %s267 = sphi 0, %s267
    %s269 = sphi 0, %s267
    %s270 = sphi 0, %s269
    %s284 = sphi 0, %s270
    %s288 = sphi 0, %s288
    %s290 = sphi 0, %s288
    %s291 = sphi 0, %s290
    %s305 = sphi 0, %s291
    %s309 = sphi 0, %s309
    %s311 = sphi 0, %s309
    %s312 = sphi 0, %s311
    %s326 = sphi 0, %s312
    %s330 = sphi 0, %s330
    %s332 = sphi 0, %s330
    %s333 = sphi 0, %s332
    %s347 = sphi 0, %s333
    %s351 = sphi 0, %s351
    %s353 = sphi 0, %s351
    %s354 = sphi 0, %s353
    %s368 = sphi 0, %s354
    %s372 = sphi 0, %s372
    %s374 = sphi 0, %s372
    %s375 = sphi 0, %s374
    %s389 = sphi 0, %s375
    %s395 = sphi 0, %s397
    %s398 = sphi 0, %s395
    %s399 = sphi 0, %s398
    %s415 = sphi 0, %s399
  $region4: #{gpt2_forward.3} parent=0 // loop_header_branch
    %26 = sbr.rel (%p24) target = $region8
  $region5: #{gpt2_forward.3} parent=0 // loop_body
    %s28 = ssub.s32 %s23, 1
    %s29 = ssub.s32 %s23, 2
    %s30 = sadd.s32 %s23, 1
    %s31 = ssub.s32 %s23, %s30
    %p32 = scmp.eq.s32.totalorder %s31, 0
    %s34 = sadd.s32 %s33, 1
    %s35 = scalar_select %p32, %s33, %s34
    %p38 = pneg %p32
    %p39 = scmp.eq.s32.totalorder %s23, 1
    %p40 = por %p38, %p39
    %p41 = scmp.ne.s32.totalorder %s33, %s36
    %p42 = scmp.eq.s32.totalorder %s23, 0
    %p43 = por %p41, %p42
    %p44 = scmp.ne.s32.totalorder %s33, %s36
    %p45 = scmp.eq.s32.totalorder %s28, 1
    %p46 = por %p44, %p45
    %p47 = scmp.ne.s32.totalorder %s36, %s37
    %p48 = scmp.eq.s32.totalorder %s28, 0
    %p49 = por %p47, %p48
    %p50 = scmp.ne.s32.totalorder %s36, %s37
    %p51 = scmp.eq.s32.totalorder %s29, 1
    %p52 = por %p50, %p51
    %p54 = scmp.ne.s32.totalorder %s37, %s53
    %p55 = scmp.eq.s32.totalorder %s29, 0
    %p56 = por %p54, %p55
    %s58 = sadd.s32 %s57, 1
    %p61 = scmp.eq.s32.totalorder %s23, 1
    %p62 = scmp.ne.s32.totalorder %s57, %s59
    %p63 = scmp.eq.s32.totalorder %s23, 0
    %p64 = por %p62, %p63
    %p65 = scmp.ne.s32.totalorder %s57, %s59
    %p66 = scmp.eq.s32.totalorder %s28, 1
    %p67 = por %p65, %p66
    %p68 = scmp.ne.s32.totalorder %s59, %s60
    %p69 = scmp.eq.s32.totalorder %s28, 0
    %p70 = por %p68, %p69
    %p71 = scmp.ne.s32.totalorder %s59, %s60
    %p72 = scmp.eq.s32.totalorder %s29, 1
    %p73 = por %p71, %p72
    %p75 = scmp.ne.s32.totalorder %s60, %s74
    %p76 = scmp.eq.s32.totalorder %s29, 0
    %p77 = por %p75, %p76
    %s79 = sadd.s32 %s78, 1
    %p82 = scmp.eq.s32.totalorder %s23, 1
    %p83 = scmp.ne.s32.totalorder %s78, %s80
    %p84 = scmp.eq.s32.totalorder %s23, 0
    %p85 = por %p83, %p84
    %p86 = scmp.ne.s32.totalorder %s78, %s80
    %p87 = scmp.eq.s32.totalorder %s28, 1
    %p88 = por %p86, %p87
    %p89 = scmp.ne.s32.totalorder %s80, %s81
    %p90 = scmp.eq.s32.totalorder %s28, 0
    %p91 = por %p89, %p90
    %p92 = scmp.ne.s32.totalorder %s80, %s81
    %p93 = scmp.eq.s32.totalorder %s29, 1
    %p94 = por %p92, %p93
    %p96 = scmp.ne.s32.totalorder %s81, %s95
    %p97 = scmp.eq.s32.totalorder %s29, 0
    %p98 = por %p96, %p97
    %s100 = sadd.s32 %s99, 1
    %p103 = scmp.eq.s32.totalorder %s23, 1
    %p104 = scmp.ne.s32.totalorder %s99, %s101
    %p105 = scmp.eq.s32.totalorder %s23, 0
    %p106 = por %p104, %p105
    %p107 = scmp.ne.s32.totalorder %s99, %s101
    %p108 = scmp.eq.s32.totalorder %s28, 1
    %p109 = por %p107, %p108
    %p110 = scmp.ne.s32.totalorder %s101, %s102
    %p111 = scmp.eq.s32.totalorder %s28, 0
    %p112 = por %p110, %p111
    %p113 = scmp.ne.s32.totalorder %s101, %s102
    %p114 = scmp.eq.s32.totalorder %s29, 1
    %p115 = por %p113, %p114
    %p117 = scmp.ne.s32.totalorder %s102, %s116
    %p118 = scmp.eq.s32.totalorder %s29, 0
    %p119 = por %p117, %p118
    %s121 = sadd.s32 %s120, 1
    %p124 = scmp.eq.s32.totalorder %s23, 1
    %p125 = scmp.ne.s32.totalorder %s120, %s122
    %p126 = scmp.eq.s32.totalorder %s23, 0
    %p127 = por %p125, %p126
    %p128 = scmp.ne.s32.totalorder %s120, %s122
    %p129 = scmp.eq.s32.totalorder %s28, 1
    %p130 = por %p128, %p129
    %p131 = scmp.ne.s32.totalorder %s122, %s123
    %p132 = scmp.eq.s32.totalorder %s28, 0
    %p133 = por %p131, %p132
    %p134 = scmp.ne.s32.totalorder %s122, %s123
    %p135 = scmp.eq.s32.totalorder %s29, 1
    %p136 = por %p134, %p135
    %p138 = scmp.ne.s32.totalorder %s123, %s137
    %p139 = scmp.eq.s32.totalorder %s29, 0
    %p140 = por %p138, %p139
    %s142 = sadd.s32 %s141, 1
    %p145 = scmp.eq.s32.totalorder %s23, 1
    %p146 = scmp.ne.s32.totalorder %s141, %s143
    %p147 = scmp.eq.s32.totalorder %s23, 0
    %p148 = por %p146, %p147
    %p149 = scmp.ne.s32.totalorder %s141, %s143
    %p150 = scmp.eq.s32.totalorder %s28, 1
    %p151 = por %p149, %p150
    %p152 = scmp.ne.s32.totalorder %s143, %s144
    %p153 = scmp.eq.s32.totalorder %s28, 0
    %p154 = por %p152, %p153
    %p155 = scmp.ne.s32.totalorder %s143, %s144
    %p156 = scmp.eq.s32.totalorder %s29, 1
    %p157 = por %p155, %p156
    %p159 = scmp.ne.s32.totalorder %s144, %s158
    %p160 = scmp.eq.s32.totalorder %s29, 0
    %p161 = por %p159, %p160
    %s163 = sadd.s32 %s162, 1
    %p166 = scmp.eq.s32.totalorder %s23, 1
    %p167 = scmp.ne.s32.totalorder %s162, %s164
    %p168 = scmp.eq.s32.totalorder %s23, 0
    %p169 = por %p167, %p168
    %p170 = scmp.ne.s32.totalorder %s162, %s164
    %p171 = scmp.eq.s32.totalorder %s28, 1
    %p172 = por %p170, %p171
    %p173 = scmp.ne.s32.totalorder %s164, %s165
    %p174 = scmp.eq.s32.totalorder %s28, 0
    %p175 = por %p173, %p174
    %p176 = scmp.ne.s32.totalorder %s164, %s165
    %p177 = scmp.eq.s32.totalorder %s29, 1
    %p178 = por %p176, %p177
    %p180 = scmp.ne.s32.totalorder %s165, %s179
    %p181 = scmp.eq.s32.totalorder %s29, 0
    %p182 = por %p180, %p181
    %s184 = sadd.s32 %s183, 1
    %p187 = scmp.eq.s32.totalorder %s23, 1
    %p188 = scmp.ne.s32.totalorder %s183, %s185
    %p189 = scmp.eq.s32.totalorder %s23, 0
    %p190 = por %p188, %p189
    %p191 = scmp.ne.s32.totalorder %s183, %s185
    %p192 = scmp.eq.s32.totalorder %s28, 1
    %p193 = por %p191, %p192
    %p194 = scmp.ne.s32.totalorder %s185, %s186
    %p195 = scmp.eq.s32.totalorder %s28, 0
    %p196 = por %p194, %p195
    %p197 = scmp.ne.s32.totalorder %s185, %s186
    %p198 = scmp.eq.s32.totalorder %s29, 1
    %p199 = por %p197, %p198
    %p201 = scmp.ne.s32.totalorder %s186, %s200
    %p202 = scmp.eq.s32.totalorder %s29, 0
    %p203 = por %p201, %p202
    %s205 = sadd.s32 %s204, 1
    %p208 = scmp.eq.s32.totalorder %s23, 1
    %p209 = scmp.ne.s32.totalorder %s204, %s206
    %p210 = scmp.eq.s32.totalorder %s23, 0
    %p211 = por %p209, %p210
    %p212 = scmp.ne.s32.totalorder %s204, %s206
    %p213 = scmp.eq.s32.totalorder %s28, 1
    %p214 = por %p212, %p213
    %p215 = scmp.ne.s32.totalorder %s206, %s207
    %p216 = scmp.eq.s32.totalorder %s28, 0
    %p217 = por %p215, %p216
    %p218 = scmp.ne.s32.totalorder %s206, %s207
    %p219 = scmp.eq.s32.totalorder %s29, 1
    %p220 = por %p218, %p219
    %p222 = scmp.ne.s32.totalorder %s207, %s221
    %p223 = scmp.eq.s32.totalorder %s29, 0
    %p224 = por %p222, %p223
    %s226 = sadd.s32 %s225, 1
    %p229 = scmp.eq.s32.totalorder %s23, 1
    %p230 = scmp.ne.s32.totalorder %s225, %s227
    %p231 = scmp.eq.s32.totalorder %s23, 0
    %p232 = por %p230, %p231
    %p233 = scmp.ne.s32.totalorder %s225, %s227
    %p234 = scmp.eq.s32.totalorder %s28, 1
    %p235 = por %p233, %p234
    %p236 = scmp.ne.s32.totalorder %s227, %s228
    %p237 = scmp.eq.s32.totalorder %s28, 0
    %p238 = por %p236, %p237
    %p239 = scmp.ne.s32.totalorder %s227, %s228
    %p240 = scmp.eq.s32.totalorder %s29, 1
    %p241 = por %p239, %p240
    %p243 = scmp.ne.s32.totalorder %s228, %s242
    %p244 = scmp.eq.s32.totalorder %s29, 0
    %p245 = por %p243, %p244
    %s247 = sadd.s32 %s246, 1
    %p250 = scmp.eq.s32.totalorder %s23, 1
    %p251 = scmp.ne.s32.totalorder %s246, %s248
    %p252 = scmp.eq.s32.totalorder %s23, 0
    %p253 = por %p251, %p252
    %p254 = scmp.ne.s32.totalorder %s246, %s248
    %p255 = scmp.eq.s32.totalorder %s28, 1
    %p256 = por %p254, %p255
    %p257 = scmp.ne.s32.totalorder %s248, %s249
    %p258 = scmp.eq.s32.totalorder %s28, 0
    %p259 = por %p257, %p258
    %p260 = scmp.ne.s32.totalorder %s248, %s249
    %p261 = scmp.eq.s32.totalorder %s29, 1
    %p262 = por %p260, %p261
    %p264 = scmp.ne.s32.totalorder %s249, %s263
    %p265 = scmp.eq.s32.totalorder %s29, 0
    %p266 = por %p264, %p265
    %s268 = sadd.s32 %s267, 1
    %p271 = scmp.eq.s32.totalorder %s23, 1
    %p272 = scmp.ne.s32.totalorder %s267, %s269
    %p273 = scmp.eq.s32.totalorder %s23, 0
    %p274 = por %p272, %p273
    %p275 = scmp.ne.s32.totalorder %s267, %s269
    %p276 = scmp.eq.s32.totalorder %s28, 1
    %p277 = por %p275, %p276
    %p278 = scmp.ne.s32.totalorder %s269, %s270
    %p279 = scmp.eq.s32.totalorder %s28, 0
    %p280 = por %p278, %p279
    %p281 = scmp.ne.s32.totalorder %s269, %s270
    %p282 = scmp.eq.s32.totalorder %s29, 1
    %p283 = por %p281, %p282
    %p285 = scmp.ne.s32.totalorder %s270, %s284
    %p286 = scmp.eq.s32.totalorder %s29, 0
    %p287 = por %p285, %p286
    %s289 = sadd.s32 %s288, 1
    %p292 = scmp.eq.s32.totalorder %s23, 1
    %p293 = scmp.ne.s32.totalorder %s288, %s290
    %p294 = scmp.eq.s32.totalorder %s23, 0
    %p295 = por %p293, %p294
    %p296 = scmp.ne.s32.totalorder %s288, %s290
    %p297 = scmp.eq.s32.totalorder %s28, 1
    %p298 = por %p296, %p297
    %p299 = scmp.ne.s32.totalorder %s290, %s291
    %p300 = scmp.eq.s32.totalorder %s28, 0
    %p301 = por %p299, %p300
    %p302 = scmp.ne.s32.totalorder %s290, %s291
    %p303 = scmp.eq.s32.totalorder %s29, 1
    %p304 = por %p302, %p303
    %p306 = scmp.ne.s32.totalorder %s291, %s305
    %p307 = scmp.eq.s32.totalorder %s29, 0
    %p308 = por %p306, %p307
    %s310 = sadd.s32 %s309, 1
    %p313 = scmp.eq.s32.totalorder %s23, 1
    %p314 = scmp.ne.s32.totalorder %s309, %s311
    %p315 = scmp.eq.s32.totalorder %s23, 0
    %p316 = por %p314, %p315
    %p317 = scmp.ne.s32.totalorder %s309, %s311
    %p318 = scmp.eq.s32.totalorder %s28, 1
    %p319 = por %p317, %p318
    %p320 = scmp.ne.s32.totalorder %s311, %s312
    %p321 = scmp.eq.s32.totalorder %s28, 0
    %p322 = por %p320, %p321
    %p323 = scmp.ne.s32.totalorder %s311, %s312
    %p324 = scmp.eq.s32.totalorder %s29, 1
    %p325 = por %p323, %p324
    %p327 = scmp.ne.s32.totalorder %s312, %s326
    %p328 = scmp.eq.s32.totalorder %s29, 0
    %p329 = por %p327, %p328
    %s331 = sadd.s32 %s330, 1
    %p334 = scmp.eq.s32.totalorder %s23, 1
    %p335 = scmp.ne.s32.totalorder %s330, %s332
    %p336 = scmp.eq.s32.totalorder %s23, 0
    %p337 = por %p335, %p336
    %p338 = scmp.ne.s32.totalorder %s330, %s332
    %p339 = scmp.eq.s32.totalorder %s28, 1
    %p340 = por %p338, %p339
    %p341 = scmp.ne.s32.totalorder %s332, %s333
    %p342 = scmp.eq.s32.totalorder %s28, 0
    %p343 = por %p341, %p342
    %p344 = scmp.ne.s32.totalorder %s332, %s333
    %p345 = scmp.eq.s32.totalorder %s29, 1
    %p346 = por %p344, %p345
    %p348 = scmp.ne.s32.totalorder %s333, %s347
    %p349 = scmp.eq.s32.totalorder %s29, 0
    %p350 = por %p348, %p349
    %s352 = sadd.s32 %s351, 1
    %p355 = scmp.eq.s32.totalorder %s23, 1
    %p356 = scmp.ne.s32.totalorder %s351, %s353
    %p357 = scmp.eq.s32.totalorder %s23, 0
    %p358 = por %p356, %p357
    %p359 = scmp.ne.s32.totalorder %s351, %s353
    %p360 = scmp.eq.s32.totalorder %s28, 1
    %p361 = por %p359, %p360
    %p362 = scmp.ne.s32.totalorder %s353, %s354
    %p363 = scmp.eq.s32.totalorder %s28, 0
    %p364 = por %p362, %p363
    %p365 = scmp.ne.s32.totalorder %s353, %s354
    %p366 = scmp.eq.s32.totalorder %s29, 1
    %p367 = por %p365, %p366
    %p369 = scmp.ne.s32.totalorder %s354, %s368
    %p370 = scmp.eq.s32.totalorder %s29, 0
    %p371 = por %p369, %p370
    %s373 = sadd.s32 %s372, 1
    %p376 = scmp.eq.s32.totalorder %s23, 1
    %p377 = scmp.ne.s32.totalorder %s372, %s374
    %p378 = scmp.eq.s32.totalorder %s23, 0
    %p379 = por %p377, %p378
    %p380 = scmp.ne.s32.totalorder %s372, %s374
    %p381 = scmp.eq.s32.totalorder %s28, 1
    %p382 = por %p380, %p381
    %p383 = scmp.ne.s32.totalorder %s374, %s375
    %p384 = scmp.eq.s32.totalorder %s28, 0
    %p385 = por %p383, %p384
    %p386 = scmp.ne.s32.totalorder %s374, %s375
    %p387 = scmp.eq.s32.totalorder %s29, 1
    %p388 = por %p386, %p387
    %p390 = scmp.ne.s32.totalorder %s375, %s389
    %p391 = scmp.eq.s32.totalorder %s29, 0
    %p392 = por %p390, %p391
    %s393 = ssub.s32 %s23, %s30
    %p394 = scmp.eq.s32.totalorder %s393, 0
    %s396 = sadd.s32 %s395, 1
    %s397 = scalar_select %p394, %s395, %s396
    %p400 = pneg %p394
    %p401 = scmp.eq.s32.totalorder %s23, 1
    %p402 = por %p400, %p401
    %p403 = scmp.ne.s32.totalorder %s395, %s398
    %p404 = scmp.eq.s32.totalorder %s23, 0
    %p405 = por %p403, %p404
    %p406 = scmp.ne.s32.totalorder %s395, %s398
    %p407 = scmp.eq.s32.totalorder %s28, 1
    %p408 = por %p406, %p407
    %p409 = scmp.ne.s32.totalorder %s398, %s399
    %p410 = scmp.eq.s32.totalorder %s28, 0
    %p411 = por %p409, %p410
    %p412 = scmp.ne.s32.totalorder %s398, %s399
    %p413 = scmp.eq.s32.totalorder %s29, 1
    %p414 = por %p412, %p413
    %p416 = scmp.ne.s32.totalorder %s399, %s415
    %p417 = scmp.eq.s32.totalorder %s29, 0
    %p418 = por %p416, %p417
    %p419 = scmp.le.s32.totalorder 1, %s23
    %p420 = scmp.lt.s32.totalorder %s23, 3
    %p421 = pnand %p419, %p420
    %p422 = pneg %p421
    // Predicated region
    $region9: #{gpt2_forward.3} parent=5 // pred_check
      _
    $region10: #{gpt2_forward.3} parent=5 // pred_check_branch
      %424 = sbr.rel (%p421) target = $region12
    $region11: #{gpt2_forward.3} parent=5 // pred_region
      %s425 = ssub.s32 %s23, 1
      // Predicated region
      $region13: #{gpt2_forward.3} parent=11 // pred_check
        %p426 = pneg %p70
      $region14: #{gpt2_forward.3} parent=11 // pred_check_branch
        %428 = sbr.rel (%p426) target = $region16
      $region15: #{gpt2_forward.3} parent=11 // pred_region
        _
      $region16: #{gpt2_forward.3} parent=11 // pred_fallthru
        _
      // Predicated region
      $region17: #{gpt2_forward.3} parent=11 // pred_check
        %p429 = pneg %p91
      $region18: #{gpt2_forward.3} parent=11 // pred_check_branch
        %431 = sbr.rel (%p429) target = $region20
      $region19: #{gpt2_forward.3} parent=11 // pred_region
        _
      $region20: #{gpt2_forward.3} parent=11 // pred_fallthru
        _
      // Predicated region
      $region21: #{gpt2_forward.3} parent=11 // pred_check
        %p432 = pneg %p112
      $region22: #{gpt2_forward.3} parent=11 // pred_check_branch
        %434 = sbr.rel (%p432) target = $region24
      $region23: #{gpt2_forward.3} parent=11 // pred_region
        _
      $region24: #{gpt2_forward.3} parent=11 // pred_fallthru
        _
      // Predicated region
      $region25: #{gpt2_forward.3} parent=11 // pred_check
        %p435 = pneg %p133
      $region26: #{gpt2_forward.3} parent=11 // pred_check_branch
        %437 = sbr.rel (%p435) target = $region28
      $region27: #{gpt2_forward.3} parent=11 // pred_region
        _
      $region28: #{gpt2_forward.3} parent=11 // pred_fallthru
        _
      // Predicated region
      $region29: #{gpt2_forward.3} parent=11 // pred_check
        %p438 = pneg %p154
      $region30: #{gpt2_forward.3} parent=11 // pred_check_branch
        %440 = sbr.rel (%p438) target = $region32
      $region31: #{gpt2_forward.3} parent=11 // pred_region
        _
      $region32: #{gpt2_forward.3} parent=11 // pred_fallthru
        _
      // Predicated region
      $region33: #{gpt2_forward.3} parent=11 // pred_check
        %p441 = pneg %p175
      $region34: #{gpt2_forward.3} parent=11 // pred_check_branch
        %443 = sbr.rel (%p441) target = $region36
      $region35: #{gpt2_forward.3} parent=11 // pred_region
        _
      $region36: #{gpt2_forward.3} parent=11 // pred_fallthru
        _
      // Predicated region
      $region37: #{gpt2_forward.3} parent=11 // pred_check
        %p444 = pneg %p196
      $region38: #{gpt2_forward.3} parent=11 // pred_check_branch
        %446 = sbr.rel (%p444) target = $region40
      $region39: #{gpt2_forward.3} parent=11 // pred_region
        _
      $region40: #{gpt2_forward.3} parent=11 // pred_fallthru
        _
      // Predicated region
      $region41: #{gpt2_forward.3} parent=11 // pred_check
        %p447 = pneg %p217
      $region42: #{gpt2_forward.3} parent=11 // pred_check_branch
        %449 = sbr.rel (%p447) target = $region44
      $region43: #{gpt2_forward.3} parent=11 // pred_region
        _
      $region44: #{gpt2_forward.3} parent=11 // pred_fallthru
        _
      // Predicated region
      $region45: #{gpt2_forward.3} parent=11 // pred_check
        %p450 = pneg %p238
      $region46: #{gpt2_forward.3} parent=11 // pred_check_branch
        %452 = sbr.rel (%p450) target = $region48
      $region47: #{gpt2_forward.3} parent=11 // pred_region
        _
      $region48: #{gpt2_forward.3} parent=11 // pred_fallthru
        _
      // Predicated region
      $region49: #{gpt2_forward.3} parent=11 // pred_check
        %p453 = pneg %p259
      $region50: #{gpt2_forward.3} parent=11 // pred_check_branch
        %455 = sbr.rel (%p453) target = $region52
      $region51: #{gpt2_forward.3} parent=11 // pred_region
        _
      $region52: #{gpt2_forward.3} parent=11 // pred_fallthru
        _
      // Predicated region
      $region53: #{gpt2_forward.3} parent=11 // pred_check
        %p456 = pneg %p280
      $region54: #{gpt2_forward.3} parent=11 // pred_check_branch
        %458 = sbr.rel (%p456) target = $region56
      $region55: #{gpt2_forward.3} parent=11 // pred_region
        _
      $region56: #{gpt2_forward.3} parent=11 // pred_fallthru
        _
      // Predicated region
      $region57: #{gpt2_forward.3} parent=11 // pred_check
        %p459 = pneg %p301
      $region58: #{gpt2_forward.3} parent=11 // pred_check_branch
        %461 = sbr.rel (%p459) target = $region60
      $region59: #{gpt2_forward.3} parent=11 // pred_region
        _
      $region60: #{gpt2_forward.3} parent=11 // pred_fallthru
        _
      // Predicated region
      $region61: #{gpt2_forward.3} parent=11 // pred_check
        %p462 = pneg %p322
      $region62: #{gpt2_forward.3} parent=11 // pred_check_branch
        %464 = sbr.rel (%p462) target = $region64
      $region63: #{gpt2_forward.3} parent=11 // pred_region
        _
      $region64: #{gpt2_forward.3} parent=11 // pred_fallthru
        _
      // Predicated region
      $region65: #{gpt2_forward.3} parent=11 // pred_check
        %p465 = pneg %p343
      $region66: #{gpt2_forward.3} parent=11 // pred_check_branch
        %467 = sbr.rel (%p465) target = $region68
      $region67: #{gpt2_forward.3} parent=11 // pred_region
        _
      $region68: #{gpt2_forward.3} parent=11 // pred_fallthru
        _
      // Predicated region
      $region69: #{gpt2_forward.3} parent=11 // pred_check
        %p468 = pneg %p364
      $region70: #{gpt2_forward.3} parent=11 // pred_check_branch
        %470 = sbr.rel (%p468) target = $region72
      $region71: #{gpt2_forward.3} parent=11 // pred_region
        _
      $region72: #{gpt2_forward.3} parent=11 // pred_fallthru
        _
      // Predicated region
      $region73: #{gpt2_forward.3} parent=11 // pred_check
        %p471 = pneg %p385
      $region74: #{gpt2_forward.3} parent=11 // pred_check_branch
        %473 = sbr.rel (%p471) target = $region76
      $region75: #{gpt2_forward.3} parent=11 // pred_region
        _
      $region76: #{gpt2_forward.3} parent=11 // pred_fallthru
        _
    $region12: #{gpt2_forward.3} parent=5 // pred_fallthru
      _
    %p474 = scmp.lt.s32.totalorder %s23, 2
    // Predicated region
    $region77: #{gpt2_forward.3} parent=5 // pred_check
      %p475 = pneg %p474
    $region78: #{gpt2_forward.3} parent=5 // pred_check_branch
      %477 = sbr.rel (%p475) target = $region80
    $region79: #{gpt2_forward.3} parent=5 // pred_region
      // Predicated region
      $region81: #{gpt2_forward.3} parent=79 // pred_check
        %p478 = pneg %p43
      $region82: #{gpt2_forward.3} parent=79 // pred_check_branch
        %480 = sbr.rel (%p478) target = $region84
      $region83: #{gpt2_forward.3} parent=79 // pred_region
        %p481 = scmp.lt.s32.totalorder %s23, 1
        %s482 = scalar_select %p481, %s23, 1
        %s483 = smul.addr %s482, 8
        %s484 = scalar_lea.vmem %s0, %s483
      $region84: #{gpt2_forward.3} parent=79 // pred_fallthru
        _
    $region80: #{gpt2_forward.3} parent=5 // pred_fallthru
      _
    %p485 = scmp.le.s32.totalorder 1, %s23
    %p486 = scmp.lt.s32.totalorder %s23, 3
    %p487 = pnand %p485, %p486
    %p488 = pneg %p487
    // Predicated region
    $region85: #{gpt2_forward.3} parent=5 // pred_check
      _
    $region86: #{gpt2_forward.3} parent=5 // pred_check_branch
      %490 = sbr.rel (%p487) target = $region88
    $region87: #{gpt2_forward.3} parent=5 // pred_region
      %s491 = ssub.s32 %s23, 1
      %p492 = scmp.lt.s32.totalorder %s28, 1
      %s493 = scalar_select %p492, %s28, 1
      %s494 = smul.addr %s493, 8
      %s495 = scalar_lea.vmem %s0, %s494
      %p496 = pneg %p49
      %p497 = pneg %p46
      %p498 = pneg %p70
      %p499 = pneg %p67
      %p500 = pneg %p91
      %p501 = pneg %p88
      %p502 = pneg %p112
      %p503 = pneg %p109
      %p504 = pneg %p133
      %p505 = pneg %p130
      %p506 = pneg %p154
      %p507 = pneg %p151
      %p508 = pneg %p175
      %p509 = pneg %p172
      %p510 = pneg %p196
      %p511 = pneg %p193
      %p512 = pneg %p217
      %p513 = pneg %p214
      %p514 = pneg %p238
      %p515 = pneg %p235
      %p516 = pneg %p259
      %p517 = pneg %p256
      %p518 = pneg %p280
      %p519 = pneg %p277
      %p520 = pneg %p301
      %p521 = pneg %p298
      %p522 = pneg %p322
      %p523 = pneg %p319
      %p524 = pneg %p343
      %p525 = pneg %p340
      %p526 = pneg %p364
      %p527 = pneg %p361
      %p528 = pneg %p385
      %p529 = pneg %p382
      %p530 = pneg %p411
      %p531 = pneg %p408
      %p532 = scmp.lt.s32.totalorder %s28, 1
      %s533 = scalar_select %p532, %s28, 1
      %s534 = smul.addr %s533, 8
      %s535 = scalar_lea.vmem %s17, %s534
      %p536 = scmp.lt.s32.totalorder %s28, 1
      %s537 = scalar_select %p536, %s28, 1
      %s538 = smul.addr %s537, 8
      %s539 = scalar_lea.vmem %s0, %s538
      %p540 = scmp.lt.s32.totalorder %s28, 1
      %s541 = scalar_select %p540, %s28, 1
      %s542 = smul.addr %s541, 8
      %s543 = scalar_lea.vmem %s17, %s542
      %v544 = vld [vmem:[%s539] sm:$0xff]
      %v545 = vld [vmem:[%s1] sm:$0xff]
      %v546 = vld [vmem:[%s1 + $0x8] sm:$0xff]
      %v547 = vld [vmem:[%s1 + $0x10] sm:$0xff]
      %v548 = vld [vmem:[%s1 + $0x18] sm:$0xff]
      %v549 = vld [vmem:[%s2] sm:$0x1]
      %v551 = vlaneseq
      %v552 = vshrl.u32 %v551, 7
      %v553 = vsub.s32 0, %v552
      %v554 = vrot.slane %v549, %v553
      %vm556 = vcmask 261120
      %v558 = vsel %vm556, %v544, 0
      %560 = vmatprep.subr.mxu0 0.0
      %561 = vmatpush1.msra.mxu0 0.0
      %562 = vmatprep.subr.mxu0 0.0
      %563 = vmatpush1.msra.mxu0 0.0
      %564 = vmatprep.subr.mxu0 0.0
      %565 = vmatpush1.msra.mxu0 0.0
      %566 = vmatprep.subr.mxu0 0.0
      %567 = vmatpush1.msra.mxu0 0.0
      %568 = vmatprep.subr.mxu0 0.0
      %569 = vmatpush1.msra.mxu0 0.0
      %570 = vmatprep.subr.mxu0 0.0
      %571 = vmatpush1.msra.mxu0 0.0
      %572 = vmatprep.subr.mxu0 0.0
      %573 = vmatpush1.msra.mxu0 0.0
      %574 = vmatprep.subr.mxu0 0.0
      %575 = vmatpush1.msra.mxu0 0.0
      %576 = vmatprep.subr.mxu0 0.0
      %577 = vmatpush1.msra.mxu0 0.0
      %578 = vmatprep.subr.mxu0 0.0
      %579 = vmatpush1.msra.mxu0 0.0
      %580 = vmatprep.subr.mxu0 0.0
      %581 = vmatpush1.msra.mxu0 0.0
      %582 = vmatprep.subr.mxu0 0.0
      %583 = vmatpush1.msra.mxu0 0.0
      %584 = vmatprep.subr.mxu0 0.0
      %585 = vmatpush1.msra.mxu0 %v548
      %586 = vmatprep.subr.mxu0 0.0
      %587 = vmatpush1.msra.mxu0 %v547
      %588 = vmatprep.subr.mxu0 0.0
      %589 = vmatpush1.msra.mxu0 %v546
      %590 = vmatprep.subr.mxu0 0.0
      %591 = vmatpush1.msra.mxu0 %v545
      %592 = vmatprep.subr.mxu0 0.0
      %593 = vmatpush2.msra.mxu0 0.0
      %594 = vmatprep.subr.mxu0 0.0
      %595 = vmatpush2.msra.mxu0 0.0
      %596 = vmatprep.subr.mxu0 0.0
      %597 = vmatpush2.msra.mxu0 0.0
      %598 = vmatprep.subr.mxu0 0.0
      %599 = vmatpush2.msra.mxu0 0.0
      %600 = vmatprep.subr.mxu0 0.0
      %601 = vmatpush2.msra.mxu0 0.0
      %602 = vmatprep.subr.mxu0 0.0
      %603 = vmatpush2.msra.mxu0 0.0
      %604 = vmatprep.subr.mxu0 0.0
      %605 = vmatpush2.msra.mxu0 0.0
      %606 = vmatprep.subr.mxu0 0.0
      %607 = vmatpush2.msra.mxu0 0.0
      %608 = vmatprep.subr.mxu0 0.0
      %609 = vmatpush2.msra.mxu0 0.0
      %610 = vmatprep.subr.mxu0 0.0
      %611 = vmatpush2.msra.mxu0 0.0
      %612 = vmatprep.subr.mxu0 0.0
      %613 = vmatpush2.msra.mxu0 0.0
      %614 = vmatprep.subr.mxu0 0.0
      %615 = vmatpush2.msra.mxu0 0.0
      %616 = vmatprep.subr.mxu0 0.0
      %617 = vmatpush2.msra.mxu0 0.0
      %618 = vmatprep.subr.mxu0 0.0
      %619 = vmatpush2.msra.mxu0 0.0
      %620 = vmatprep.subr.mxu0 0.0
      %621 = vmatpush2.msra.mxu0 0.0
      %622 = vmatprep.subr.mxu0 0.0
      %623 = vmatpush2.msra.mxu0 0.0
      %624 = vmatprep.mubr.f32.mxu0 0.0
      %625 = vmatmul.mubr.f32.gmra.mxu0 %v558
      %v626 = vpop.f32.mrf.mxu0
      %v627 = vadd.f32 %v554, %v626
      %v628 = vpop.f32.mrf.mxu0
      %629 = vdwg.mxu0
      %v630 = vld [vmem:[%s3] sm:$0xff]
      %v631 = vld [vmem:[%s3 + $0x8] sm:$0xff]
      %v632 = vld [vmem:[%s3 + $0x10] sm:$0xff]
      %v633 = vld [vmem:[%s3 + $0x18] sm:$0xff]
      %v634 = vld [vmem:[%s4] sm:$0x1]
      %v636 = vlaneseq
      %v637 = vshrl.u32 %v636, 7
      %v638 = vsub.s32 0, %v637
      %v639 = vrot.slane %v634, %v638
      %641 = vmatprep.subr.mxu0 0.0
      %642 = vmatpush1.msra.mxu0 0.0
      %643 = vmatprep.subr.mxu0 0.0
      %644 = vmatpush1.msra.mxu0 0.0
      %645 = vmatprep.subr.mxu0 0.0
      %646 = vmatpush1.msra.mxu0 0.0
      %647 = vmatprep.subr.mxu0 0.0
      %648 = vmatpush1.msra.mxu0 0.0
      %649 = vmatprep.subr.mxu0 0.0
      %650 = vmatpush1.msra.mxu0 0.0
      %651 = vmatprep.subr.mxu0 0.0
      %652 = vmatpush1.msra.mxu0 0.0
      %653 = vmatprep.subr.mxu0 0.0
      %654 = vmatpush1.msra.mxu0 0.0
      %655 = vmatprep.subr.mxu0 0.0
      %656 = vmatpush1.msra.mxu0 0.0
      %657 = vmatprep.subr.mxu0 0.0
      %658 = vmatpush1.msra.mxu0 0.0
      %659 = vmatprep.subr.mxu0 0.0
      %660 = vmatpush1.msra.mxu0 0.0
      %661 = vmatprep.subr.mxu0 0.0
      %662 = vmatpush1.msra.mxu0 0.0
      %663 = vmatprep.subr.mxu0 0.0
      %664 = vmatpush1.msra.mxu0 0.0
      %665 = vmatprep.subr.mxu0 0.0
      %666 = vmatpush1.msra.mxu0 %v633
      %667 = vmatprep.subr.mxu0 0.0
      %668 = vmatpush1.msra.mxu0 %v632
      %669 = vmatprep.subr.mxu0 0.0
      %670 = vmatpush1.msra.mxu0 %v631
      %671 = vmatprep.subr.mxu0 0.0
      %672 = vmatpush1.msra.mxu0 %v630
      %673 = vmatprep.subr.mxu0 0.0
      %674 = vmatpush2.msra.mxu0 0.0
      %675 = vmatprep.subr.mxu0 0.0
      %676 = vmatpush2.msra.mxu0 0.0
      %677 = vmatprep.subr.mxu0 0.0
      %678 = vmatpush2.msra.mxu0 0.0
      %679 = vmatprep.subr.mxu0 0.0
      %680 = vmatpush2.msra.mxu0 0.0
      %681 = vmatprep.subr.mxu0 0.0
      %682 = vmatpush2.msra.mxu0 0.0
      %683 = vmatprep.subr.mxu0 0.0
      %684 = vmatpush2.msra.mxu0 0.0
      %685 = vmatprep.subr.mxu0 0.0
      %686 = vmatpush2.msra.mxu0 0.0
      %687 = vmatprep.subr.mxu0 0.0
      %688 = vmatpush2.msra.mxu0 0.0
      %689 = vmatprep.subr.mxu0 0.0
      %690 = vmatpush2.msra.mxu0 0.0
      %691 = vmatprep.subr.mxu0 0.0
      %692 = vmatpush2.msra.mxu0 0.0
      %693 = vmatprep.subr.mxu0 0.0
      %694 = vmatpush2.msra.mxu0 0.0
      %695 = vmatprep.subr.mxu0 0.0
      %696 = vmatpush2.msra.mxu0 0.0
      %697 = vmatprep.subr.mxu0 0.0
      %698 = vmatpush2.msra.mxu0 0.0
      %699 = vmatprep.subr.mxu0 0.0
      %700 = vmatpush2.msra.mxu0 0.0
      %701 = vmatprep.subr.mxu0 0.0
      %702 = vmatpush2.msra.mxu0 0.0
      %703 = vmatprep.subr.mxu0 0.0
      %704 = vmatpush2.msra.mxu0 0.0
      %705 = vmatprep.mubr.f32.mxu0 0.0
      %706 = vmatmul.mubr.f32.gmra.mxu0 %v558
      %v707 = vpop.f32.mrf.mxu0
      %v708 = vadd.f32 %v639, %v707
      %v709 = vpop.f32.mrf.mxu0
      %710 = vdwg.mxu0
      %v711 = vld [vmem:[%s5] sm:$0xff]
      %v712 = vld [vmem:[%s5 + $0x8] sm:$0xff]
      %v713 = vld [vmem:[%s5 + $0x10] sm:$0xff]
      %v714 = vld [vmem:[%s5 + $0x18] sm:$0xff]
      %v715 = vld [vmem:[%s6] sm:$0x1]
      %v717 = vlaneseq
      %v718 = vshrl.u32 %v717, 7
      %v719 = vsub.s32 0, %v718
      %v720 = vrot.slane %v715, %v719
      %722 = vmatprep.subr.mxu0 0.0
      %723 = vmatpush1.msra.mxu0 0.0
      %724 = vmatprep.subr.mxu0 0.0
      %725 = vmatpush1.msra.mxu0 0.0
      %726 = vmatprep.subr.mxu0 0.0
      %727 = vmatpush1.msra.mxu0 0.0
      %728 = vmatprep.subr.mxu0 0.0
      %729 = vmatpush1.msra.mxu0 0.0
      %730 = vmatprep.subr.mxu0 0.0
      %731 = vmatpush1.msra.mxu0 0.0
      %732 = vmatprep.subr.mxu0 0.0
      %733 = vmatpush1.msra.mxu0 0.0
      %734 = vmatprep.subr.mxu0 0.0
      %735 = vmatpush1.msra.mxu0 0.0
      %736 = vmatprep.subr.mxu0 0.0
      %737 = vmatpush1.msra.mxu0 0.0
      %738 = vmatprep.subr.mxu0 0.0
      %739 = vmatpush1.msra.mxu0 0.0
      %740 = vmatprep.subr.mxu0 0.0
      %741 = vmatpush1.msra.mxu0 0.0
      %742 = vmatprep.subr.mxu0 0.0
      %743 = vmatpush1.msra.mxu0 0.0
      %744 = vmatprep.subr.mxu0 0.0
      %745 = vmatpush1.msra.mxu0 0.0
      %746 = vmatprep.subr.mxu0 0.0
      %747 = vmatpush1.msra.mxu0 %v714
      %748 = vmatprep.subr.mxu0 0.0
      %749 = vmatpush1.msra.mxu0 %v713
      %750 = vmatprep.subr.mxu0 0.0
      %751 = vmatpush1.msra.mxu0 %v712
      %752 = vmatprep.subr.mxu0 0.0
      %753 = vmatpush1.msra.mxu0 %v711
      %754 = vmatprep.subr.mxu0 0.0
      %755 = vmatpush2.msra.mxu0 0.0
      %756 = vmatprep.subr.mxu0 0.0
      %757 = vmatpush2.msra.mxu0 0.0
      %758 = vmatprep.subr.mxu0 0.0
      %759 = vmatpush2.msra.mxu0 0.0
      %760 = vmatprep.subr.mxu0 0.0
      %761 = vmatpush2.msra.mxu0 0.0
      %762 = vmatprep.subr.mxu0 0.0
      %763 = vmatpush2.msra.mxu0 0.0
      %764 = vmatprep.subr.mxu0 0.0
      %765 = vmatpush2.msra.mxu0 0.0
      %766 = vmatprep.subr.mxu0 0.0
      %767 = vmatpush2.msra.mxu0 0.0
      %768 = vmatprep.subr.mxu0 0.0
      %769 = vmatpush2.msra.mxu0 0.0
      %770 = vmatprep.subr.mxu0 0.0
      %771 = vmatpush2.msra.mxu0 0.0
      %772 = vmatprep.subr.mxu0 0.0
      %773 = vmatpush2.msra.mxu0 0.0
      %774 = vmatprep.subr.mxu0 0.0
      %775 = vmatpush2.msra.mxu0 0.0
      %776 = vmatprep.subr.mxu0 0.0
      %777 = vmatpush2.msra.mxu0 0.0
      %778 = vmatprep.subr.mxu0 0.0
      %779 = vmatpush2.msra.mxu0 0.0
      %780 = vmatprep.subr.mxu0 0.0
      %781 = vmatpush2.msra.mxu0 0.0
      %782 = vmatprep.subr.mxu0 0.0
      %783 = vmatpush2.msra.mxu0 0.0
      %784 = vmatprep.subr.mxu0 0.0
      %785 = vmatpush2.msra.mxu0 0.0
      %786 = vmatprep.mubr.f32.mxu0 0.0
      %787 = vmatmul.mubr.f32.gmra.mxu0 %v558
      %v788 = vpop.f32.mrf.mxu0
      %v789 = vadd.f32 %v720, %v788
      %v790 = vpop.f32.mrf.mxu0
      %791 = vdwg.mxu0
      %v792 = vlaneseq
      %v793 = vshrl.u32 %v792, 7
      %v794 = vlaneseq
      %v795 = vand.u32 %v794, 127
      %vm796 = vcmp.gt.s32.totalorder %v795, %v793
      %v797 = vsel %vm796, -1e+30, 0.0
      %v798 = vmul.f32 %v627, 0.35355338
      %vm799 = vcmask 64512
      %v801 = vsel %vm799, %v798, 0
      %v804 = vsel %vm799, %v708, 0
      %806 = vmatprep.subr.mxu0 0.0
      %807 = vmatpush1.xpose.msra.mxu0 0.0
      %808 = vmatprep.subr.mxu0 0.0
      %809 = vmatpush1.xpose.msra.mxu0 0.0
      %810 = vmatprep.subr.mxu0 0.0
      %811 = vmatpush1.xpose.msra.mxu0 0.0
      %812 = vmatprep.subr.mxu0 0.0
      %813 = vmatpush1.xpose.msra.mxu0 0.0
      %814 = vmatprep.subr.mxu0 0.0
      %815 = vmatpush1.xpose.msra.mxu0 0.0
      %816 = vmatprep.subr.mxu0 0.0
      %817 = vmatpush1.xpose.msra.mxu0 0.0
      %818 = vmatprep.subr.mxu0 0.0
      %819 = vmatpush1.xpose.msra.mxu0 0.0
      %820 = vmatprep.subr.mxu0 0.0
      %821 = vmatpush1.xpose.msra.mxu0 0.0
      %822 = vmatprep.subr.mxu0 0.0
      %823 = vmatpush1.xpose.msra.mxu0 0.0
      %824 = vmatprep.subr.mxu0 0.0
      %825 = vmatpush1.xpose.msra.mxu0 0.0
      %826 = vmatprep.subr.mxu0 0.0
      %827 = vmatpush1.xpose.msra.mxu0 0.0
      %828 = vmatprep.subr.mxu0 0.0
      %829 = vmatpush1.xpose.msra.mxu0 0.0
      %830 = vmatprep.subr.mxu0 0.0
      %831 = vmatpush1.xpose.msra.mxu0 0.0
      %832 = vmatprep.subr.mxu0 0.0
      %833 = vmatpush1.xpose.msra.mxu0 0.0
      %834 = vmatprep.subr.mxu0 0.0
      %835 = vmatpush1.xpose.msra.mxu0 0.0
      %836 = vmatprep.subr.mxu0 0.0
      %837 = vmatpush1.xpose.msra.mxu0 %v804
      %838 = vmatprep.subr.mxu0 0.0
      %839 = vmatpush2.xpose.msra.mxu0 0.0
      %840 = vmatprep.subr.mxu0 0.0
      %841 = vmatpush2.xpose.msra.mxu0 0.0
      %842 = vmatprep.subr.mxu0 0.0
      %843 = vmatpush2.xpose.msra.mxu0 0.0
      %844 = vmatprep.subr.mxu0 0.0
      %845 = vmatpush2.xpose.msra.mxu0 0.0
      %846 = vmatprep.subr.mxu0 0.0
      %847 = vmatpush2.xpose.msra.mxu0 0.0
      %848 = vmatprep.subr.mxu0 0.0
      %849 = vmatpush2.xpose.msra.mxu0 0.0
      %850 = vmatprep.subr.mxu0 0.0
      %851 = vmatpush2.xpose.msra.mxu0 0.0
      %852 = vmatprep.subr.mxu0 0.0
      %853 = vmatpush2.xpose.msra.mxu0 0.0
      %854 = vmatprep.subr.mxu0 0.0
      %855 = vmatpush2.xpose.msra.mxu0 0.0
      %856 = vmatprep.subr.mxu0 0.0
      %857 = vmatpush2.xpose.msra.mxu0 0.0
      %858 = vmatprep.subr.mxu0 0.0
      %859 = vmatpush2.xpose.msra.mxu0 0.0
      %860 = vmatprep.subr.mxu0 0.0
      %861 = vmatpush2.xpose.msra.mxu0 0.0
      %862 = vmatprep.subr.mxu0 0.0
      %863 = vmatpush2.xpose.msra.mxu0 0.0
      %864 = vmatprep.subr.mxu0 0.0
      %865 = vmatpush2.xpose.msra.mxu0 0.0
      %866 = vmatprep.subr.mxu0 0.0
      %867 = vmatpush2.xpose.msra.mxu0 0.0
      %868 = vmatprep.subr.mxu0 0.0
      %869 = vmatpush2.xpose.msra.mxu0 0.0
      %870 = vmatprep.mubr.f32.mxu0 0.0
      %871 = vmatmul.mubr.f32.gmra.mxu0 %v801
      %v872 = vpop.f32.mrf.mxu0
      %v873 = vadd.f32 %v797, %v872
      %v874 = vpop.f32.mrf.mxu0
      %875 = vdwg.mxu0
      %v876 = vsel %vm799, %v873, -inf
      %877 = vmax.xlane.f32.xlu0 %v876
      %v878 = vpop.xlane.xlu0 %877
      %v879 = vsub.f32 %v873, %v878
      %v880 = vmul.f32 %v879, 1.442695
      %v881 = vpow.pop %v880
      %v882 = vsel %vm799, %v881, 0.0
      %883 = vadd.xlane.f32.xlu0 %v882
      %v884 = vpop.xlane.xlu0 %883
      %v885 = vrcp.pop %v884
      %v886 = vmul.f32 %v881, %v885
      %v888 = vsel %vm799, %v886, 0
      %890 = vmatprep.subr.mxu0 0.0
      %891 = vmatpush1.msra.mxu0 0.0
      %892 = vmatprep.subr.mxu0 0.0
      %893 = vmatpush1.msra.mxu0 0.0
      %894 = vmatprep.subr.mxu0 0.0
      %895 = vmatpush1.msra.mxu0 0.0
      %896 = vmatprep.subr.mxu0 0.0
      %897 = vmatpush1.msra.mxu0 0.0
      %898 = vmatprep.subr.mxu0 0.0
      %899 = vmatpush1.msra.mxu0 0.0
      %900 = vmatprep.subr.mxu0 0.0
      %901 = vmatpush1.msra.mxu0 0.0
      %902 = vmatprep.subr.mxu0 0.0
      %903 = vmatpush1.msra.mxu0 0.0
      %904 = vmatprep.subr.mxu0 0.0
      %905 = vmatpush1.msra.mxu0 0.0
      %906 = vmatprep.subr.mxu0 0.0
      %907 = vmatpush1.msra.mxu0 0.0
      %908 = vmatprep.subr.mxu0 0.0
      %909 = vmatpush1.msra.mxu0 0.0
      %910 = vmatprep.subr.mxu0 0.0
      %911 = vmatpush1.msra.mxu0 0.0
      %912 = vmatprep.subr.mxu0 0.0
      %913 = vmatpush1.msra.mxu0 0.0
      %914 = vmatprep.subr.mxu0 0.0
      %915 = vmatpush1.msra.mxu0 0.0
      %916 = vmatprep.subr.mxu0 0.0
      %917 = vmatpush1.msra.mxu0 0.0
      %918 = vmatprep.subr.mxu0 0.0
      %919 = vmatpush1.msra.mxu0 0.0
      %920 = vmatprep.subr.mxu0 0.0
      %921 = vmatpush1.msra.mxu0 %v789
      %922 = vmatprep.subr.mxu0 0.0
      %923 = vmatpush2.msra.mxu0 0.0
      %924 = vmatprep.subr.mxu0 0.0
      %925 = vmatpush2.msra.mxu0 0.0
      %926 = vmatprep.subr.mxu0 0.0
      %927 = vmatpush2.msra.mxu0 0.0
      %928 = vmatprep.subr.mxu0 0.0
      %929 = vmatpush2.msra.mxu0 0.0
      %930 = vmatprep.subr.mxu0 0.0
      %931 = vmatpush2.msra.mxu0 0.0
      %932 = vmatprep.subr.mxu0 0.0
      %933 = vmatpush2.msra.mxu0 0.0
      %934 = vmatprep.subr.mxu0 0.0
      %935 = vmatpush2.msra.mxu0 0.0
      %936 = vmatprep.subr.mxu0 0.0
      %937 = vmatpush2.msra.mxu0 0.0
      %938 = vmatprep.subr.mxu0 0.0
      %939 = vmatpush2.msra.mxu0 0.0
      %940 = vmatprep.subr.mxu0 0.0
      %941 = vmatpush2.msra.mxu0 0.0
      %942 = vmatprep.subr.mxu0 0.0
      %943 = vmatpush2.msra.mxu0 0.0
      %944 = vmatprep.subr.mxu0 0.0
      %945 = vmatpush2.msra.mxu0 0.0
      %946 = vmatprep.subr.mxu0 0.0
      %947 = vmatpush2.msra.mxu0 0.0
      %948 = vmatprep.subr.mxu0 0.0
      %949 = vmatpush2.msra.mxu0 0.0
      %950 = vmatprep.subr.mxu0 0.0
      %951 = vmatpush2.msra.mxu0 0.0
      %952 = vmatprep.subr.mxu0 0.0
      %953 = vmatpush2.msra.mxu0 0.0
      %954 = vmatprep.mubr.f32.mxu0 0.0
      %955 = vmatmul.mubr.f32.gmra.mxu0 %v888
      %v956 = vpop.f32.mrf.mxu0
      %v957 = vadd.f32 0.0, %v956
      %v958 = vpop.f32.mrf.mxu0
      %959 = vdwg.mxu0
      %v960 = vld [vmem:[%s7] sm:$0xff]
      %961 = vrot.lane.b32.xlu0 %v798, 120
      %v962 = vpop.permute.xlu0 %961
      %963 = vrot.lane.b32.xlu0 %v708, 120
      %v964 = vpop.permute.xlu0 %963
      %v965 = vsel %vm799, %v962, 0
      %v967 = vsel %vm799, %v964, 0
      %969 = vmatprep.subr.mxu0 0.0
      %970 = vmatpush1.xpose.msra.mxu0 0.0
      %971 = vmatprep.subr.mxu0 0.0
      %972 = vmatpush1.xpose.msra.mxu0 0.0
      %973 = vmatprep.subr.mxu0 0.0
      %974 = vmatpush1.xpose.msra.mxu0 0.0
      %975 = vmatprep.subr.mxu0 0.0
      %976 = vmatpush1.xpose.msra.mxu0 0.0
      %977 = vmatprep.subr.mxu0 0.0
      %978 = vmatpush1.xpose.msra.mxu0 0.0
      %979 = vmatprep.subr.mxu0 0.0
      %980 = vmatpush1.xpose.msra.mxu0 0.0
      %981 = vmatprep.subr.mxu0 0.0
      %982 = vmatpush1.xpose.msra.mxu0 0.0
      %983 = vmatprep.subr.mxu0 0.0
      %984 = vmatpush1.xpose.msra.mxu0 0.0
      %985 = vmatprep.subr.mxu0 0.0
      %986 = vmatpush1.xpose.msra.mxu0 0.0
      %987 = vmatprep.subr.mxu0 0.0
      %988 = vmatpush1.xpose.msra.mxu0 0.0
      %989 = vmatprep.subr.mxu0 0.0
      %990 = vmatpush1.xpose.msra.mxu0 0.0
      %991 = vmatprep.subr.mxu0 0.0
      %992 = vmatpush1.xpose.msra.mxu0 0.0
      %993 = vmatprep.subr.mxu0 0.0
      %994 = vmatpush1.xpose.msra.mxu0 0.0
      %995 = vmatprep.subr.mxu0 0.0
      %996 = vmatpush1.xpose.msra.mxu0 0.0
      %997 = vmatprep.subr.mxu0 0.0
      %998 = vmatpush1.xpose.msra.mxu0 0.0
      %999 = vmatprep.subr.mxu0 0.0
      %1000 = vmatpush1.xpose.msra.mxu0 %v967
      %1001 = vmatprep.subr.mxu0 0.0
      %1002 = vmatpush2.xpose.msra.mxu0 0.0
      %1003 = vmatprep.subr.mxu0 0.0
      %1004 = vmatpush2.xpose.msra.mxu0 0.0
      %1005 = vmatprep.subr.mxu0 0.0
      %1006 = vmatpush2.xpose.msra.mxu0 0.0
      %1007 = vmatprep.subr.mxu0 0.0
      %1008 = vmatpush2.xpose.msra.mxu0 0.0
      %1009 = vmatprep.subr.mxu0 0.0
      %1010 = vmatpush2.xpose.msra.mxu0 0.0
      %1011 = vmatprep.subr.mxu0 0.0
      %1012 = vmatpush2.xpose.msra.mxu0 0.0
      %1013 = vmatprep.subr.mxu0 0.0
      %1014 = vmatpush2.xpose.msra.mxu0 0.0
      %1015 = vmatprep.subr.mxu0 0.0
      %1016 = vmatpush2.xpose.msra.mxu0 0.0
      %1017 = vmatprep.subr.mxu0 0.0
      %1018 = vmatpush2.xpose.msra.mxu0 0.0
      %1019 = vmatprep.subr.mxu0 0.0
      %1020 = vmatpush2.xpose.msra.mxu0 0.0
      %1021 = vmatprep.subr.mxu0 0.0
      %1022 = vmatpush2.xpose.msra.mxu0 0.0
      %1023 = vmatprep.subr.mxu0 0.0
      %1024 = vmatpush2.xpose.msra.mxu0 0.0
      %1025 = vmatprep.subr.mxu0 0.0
      %1026 = vmatpush2.xpose.msra.mxu0 0.0
      %1027 = vmatprep.subr.mxu0 0.0
      %1028 = vmatpush2.xpose.msra.mxu0 0.0
      %1029 = vmatprep.subr.mxu0 0.0
      %1030 = vmatpush2.xpose.msra.mxu0 0.0
      %1031 = vmatprep.subr.mxu0 0.0
      %1032 = vmatpush2.xpose.msra.mxu0 0.0
      %1033 = vmatprep.mubr.f32.mxu0 0.0
      %1034 = vmatmul.mubr.f32.gmra.mxu0 %v965
      %v1035 = vpop.f32.mrf.mxu0
      %v1036 = vadd.f32 %v797, %v1035
      %v1037 = vpop.f32.mrf.mxu0
      %1038 = vdwg.mxu0
      %v1039 = vsel %vm799, %v1036, -inf
      %1040 = vmax.xlane.f32.xlu0 %v1039
      %v1041 = vpop.xlane.xlu0 %1040
      %v1042 = vsub.f32 %v1036, %v1041
      %v1043 = vmul.f32 %v1042, 1.442695
      %v1044 = vpow.pop %v1043
      %v1045 = vsel %vm799, %v1044, 0.0
      %1046 = vadd.xlane.f32.xlu0 %v1045
      %v1047 = vpop.xlane.xlu0 %1046
      %v1048 = vrcp.pop %v1047
      %v1049 = vmul.f32 %v1044, %v1048
      %1051 = vrot.lane.b32.xlu0 %v789, 120
      %v1052 = vpop.permute.xlu0 %1051
      %v1055 = vsel %vm799, %v1049, 0
      %1057 = vmatprep.subr.mxu0 0.0
      %1058 = vmatpush1.msra.mxu0 0.0
      %1059 = vmatprep.subr.mxu0 0.0
      %1060 = vmatpush1.msra.mxu0 0.0
      %1061 = vmatprep.subr.mxu0 0.0
      %1062 = vmatpush1.msra.mxu0 0.0
      %1063 = vmatprep.subr.mxu0 0.0
      %1064 = vmatpush1.msra.mxu0 0.0
      %1065 = vmatprep.subr.mxu0 0.0
      %1066 = vmatpush1.msra.mxu0 0.0
      %1067 = vmatprep.subr.mxu0 0.0
      %1068 = vmatpush1.msra.mxu0 0.0
      %1069 = vmatprep.subr.mxu0 0.0
      %1070 = vmatpush1.msra.mxu0 0.0
      %1071 = vmatprep.subr.mxu0 0.0
      %1072 = vmatpush1.msra.mxu0 0.0
      %1073 = vmatprep.subr.mxu0 0.0
      %1074 = vmatpush1.msra.mxu0 0.0
      %1075 = vmatprep.subr.mxu0 0.0
      %1076 = vmatpush1.msra.mxu0 0.0
      %1077 = vmatprep.subr.mxu0 0.0
      %1078 = vmatpush1.msra.mxu0 0.0
      %1079 = vmatprep.subr.mxu0 0.0
      %1080 = vmatpush1.msra.mxu0 0.0
      %1081 = vmatprep.subr.mxu0 0.0
      %1082 = vmatpush1.msra.mxu0 0.0
      %1083 = vmatprep.subr.mxu0 0.0
      %1084 = vmatpush1.msra.mxu0 0.0
      %1085 = vmatprep.subr.mxu0 0.0
      %1086 = vmatpush1.msra.mxu0 0.0
      %1087 = vmatprep.subr.mxu0 0.0
      %1088 = vmatpush1.msra.mxu0 %v1052
      %1089 = vmatprep.subr.mxu0 0.0
      %1090 = vmatpush2.msra.mxu0 0.0
      %1091 = vmatprep.subr.mxu0 0.0
      %1092 = vmatpush2.msra.mxu0 0.0
      %1093 = vmatprep.subr.mxu0 0.0
      %1094 = vmatpush2.msra.mxu0 0.0
      %1095 = vmatprep.subr.mxu0 0.0
      %1096 = vmatpush2.msra.mxu0 0.0
      %1097 = vmatprep.subr.mxu0 0.0
      %1098 = vmatpush2.msra.mxu0 0.0
      %1099 = vmatprep.subr.mxu0 0.0
      %1100 = vmatpush2.msra.mxu0 0.0
      %1101 = vmatprep.subr.mxu0 0.0
      %1102 = vmatpush2.msra.mxu0 0.0
      %1103 = vmatprep.subr.mxu0 0.0
      %1104 = vmatpush2.msra.mxu0 0.0
      %1105 = vmatprep.subr.mxu0 0.0
      %1106 = vmatpush2.msra.mxu0 0.0
      %1107 = vmatprep.subr.mxu0 0.0
      %1108 = vmatpush2.msra.mxu0 0.0
      %1109 = vmatprep.subr.mxu0 0.0
      %1110 = vmatpush2.msra.mxu0 0.0
      %1111 = vmatprep.subr.mxu0 0.0
      %1112 = vmatpush2.msra.mxu0 0.0
      %1113 = vmatprep.subr.mxu0 0.0
      %1114 = vmatpush2.msra.mxu0 0.0
      %1115 = vmatprep.subr.mxu0 0.0
      %1116 = vmatpush2.msra.mxu0 0.0
      %1117 = vmatprep.subr.mxu0 0.0
      %1118 = vmatpush2.msra.mxu0 0.0
      %1119 = vmatprep.subr.mxu0 0.0
      %1120 = vmatpush2.msra.mxu0 0.0
      %1121 = vmatprep.mubr.f32.mxu0 0.0
      %1122 = vmatmul.mubr.f32.gmra.mxu0 %v1055
      %v1123 = vpop.f32.mrf.mxu0
      %v1124 = vadd.f32 0.0, %v1123
      %v1125 = vpop.f32.mrf.mxu0
      %1126 = vdwg.mxu0
      %v1127 = vld [vmem:[%s7 + $0x8] sm:$0xff]
      %v1129 = vsel %vm799, %v1124, 0
      %1131 = vmatprep.subr.mxu0 0.0
      %1132 = vmatpush1.msra.mxu0 0.0
      %1133 = vmatprep.subr.mxu0 0.0
      %1134 = vmatpush1.msra.mxu0 0.0
      %1135 = vmatprep.subr.mxu0 0.0
      %1136 = vmatpush1.msra.mxu0 0.0
      %1137 = vmatprep.subr.mxu0 0.0
      %1138 = vmatpush1.msra.mxu0 0.0
      %1139 = vmatprep.subr.mxu0 0.0
      %1140 = vmatpush1.msra.mxu0 0.0
      %1141 = vmatprep.subr.mxu0 0.0
      %1142 = vmatpush1.msra.mxu0 0.0
      %1143 = vmatprep.subr.mxu0 0.0
      %1144 = vmatpush1.msra.mxu0 0.0
      %1145 = vmatprep.subr.mxu0 0.0
      %1146 = vmatpush1.msra.mxu0 0.0
      %1147 = vmatprep.subr.mxu0 0.0
      %1148 = vmatpush1.msra.mxu0 0.0
      %1149 = vmatprep.subr.mxu0 0.0
      %1150 = vmatpush1.msra.mxu0 0.0
      %1151 = vmatprep.subr.mxu0 0.0
      %1152 = vmatpush1.msra.mxu0 0.0
      %1153 = vmatprep.subr.mxu0 0.0
      %1154 = vmatpush1.msra.mxu0 0.0
      %1155 = vmatprep.subr.mxu0 0.0
      %1156 = vmatpush1.msra.mxu0 0.0
      %1157 = vmatprep.subr.mxu0 0.0
      %1158 = vmatpush1.msra.mxu0 0.0
      %1159 = vmatprep.subr.mxu0 0.0
      %1160 = vmatpush1.msra.mxu0 0.0
      %1161 = vmatprep.subr.mxu0 0.0
      %1162 = vmatpush1.msra.mxu0 %v1127
      %1163 = vmatprep.subr.mxu0 0.0
      %1164 = vmatpush2.msra.mxu0 0.0
      %1165 = vmatprep.subr.mxu0 0.0
      %1166 = vmatpush2.msra.mxu0 0.0
      %1167 = vmatprep.subr.mxu0 0.0
      %1168 = vmatpush2.msra.mxu0 0.0
      %1169 = vmatprep.subr.mxu0 0.0
      %1170 = vmatpush2.msra.mxu0 0.0
      %1171 = vmatprep.subr.mxu0 0.0
      %1172 = vmatpush2.msra.mxu0 0.0
      %1173 = vmatprep.subr.mxu0 0.0
      %1174 = vmatpush2.msra.mxu0 0.0
      %1175 = vmatprep.subr.mxu0 0.0
      %1176 = vmatpush2.msra.mxu0 0.0
      %1177 = vmatprep.subr.mxu0 0.0
      %1178 = vmatpush2.msra.mxu0 0.0
      %1179 = vmatprep.subr.mxu0 0.0
      %1180 = vmatpush2.msra.mxu0 0.0
      %1181 = vmatprep.subr.mxu0 0.0
      %1182 = vmatpush2.msra.mxu0 0.0
      %1183 = vmatprep.subr.mxu0 0.0
      %1184 = vmatpush2.msra.mxu0 0.0
      %1185 = vmatprep.subr.mxu0 0.0
      %1186 = vmatpush2.msra.mxu0 0.0
      %1187 = vmatprep.subr.mxu0 0.0
      %1188 = vmatpush2.msra.mxu0 0.0
      %1189 = vmatprep.subr.mxu0 0.0
      %1190 = vmatpush2.msra.mxu0 0.0
      %1191 = vmatprep.subr.mxu0 0.0
      %1192 = vmatpush2.msra.mxu0 0.0
      %1193 = vmatprep.subr.mxu0 0.0
      %1194 = vmatpush2.msra.mxu0 0.0
      %1195 = vmatprep.mubr.f32.mxu0 0.0
      %1196 = vmatmul.mubr.f32.gmra.mxu0 %v1129
      %v1197 = vpop.f32.mrf.mxu0
      %v1198 = vadd.f32 0.0, %v1197
      %v1199 = vpop.f32.mrf.mxu0
      %1200 = vdwg.mxu0
      %v1202 = vsel %vm799, %v957, 0
      %1204 = vmatprep.subr.mxu0 0.0
      %1205 = vmatpush1.msra.mxu0 0.0
      %1206 = vmatprep.subr.mxu0 0.0
      %1207 = vmatpush1.msra.mxu0 0.0
      %1208 = vmatprep.subr.mxu0 0.0
      %1209 = vmatpush1.msra.mxu0 0.0
      %1210 = vmatprep.subr.mxu0 0.0
      %1211 = vmatpush1.msra.mxu0 0.0
      %1212 = vmatprep.subr.mxu0 0.0
      %1213 = vmatpush1.msra.mxu0 0.0
      %1214 = vmatprep.subr.mxu0 0.0
      %1215 = vmatpush1.msra.mxu0 0.0
      %1216 = vmatprep.subr.mxu0 0.0
      %1217 = vmatpush1.msra.mxu0 0.0
      %1218 = vmatprep.subr.mxu0 0.0
      %1219 = vmatpush1.msra.mxu0 0.0
      %1220 = vmatprep.subr.mxu0 0.0
      %1221 = vmatpush1.msra.mxu0 0.0
      %1222 = vmatprep.subr.mxu0 0.0
      %1223 = vmatpush1.msra.mxu0 0.0
      %1224 = vmatprep.subr.mxu0 0.0
      %1225 = vmatpush1.msra.mxu0 0.0
      %1226 = vmatprep.subr.mxu0 0.0
      %1227 = vmatpush1.msra.mxu0 0.0
      %1228 = vmatprep.subr.mxu0 0.0
      %1229 = vmatpush1.msra.mxu0 0.0
      %1230 = vmatprep.subr.mxu0 0.0
      %1231 = vmatpush1.msra.mxu0 0.0
      %1232 = vmatprep.subr.mxu0 0.0
      %1233 = vmatpush1.msra.mxu0 0.0
      %1234 = vmatprep.subr.mxu0 0.0
      %1235 = vmatpush1.msra.mxu0 %v960
      %1236 = vmatprep.subr.mxu0 0.0
      %1237 = vmatpush2.msra.mxu0 0.0
      %1238 = vmatprep.subr.mxu0 0.0
      %1239 = vmatpush2.msra.mxu0 0.0
      %1240 = vmatprep.subr.mxu0 0.0
      %1241 = vmatpush2.msra.mxu0 0.0
      %1242 = vmatprep.subr.mxu0 0.0
      %1243 = vmatpush2.msra.mxu0 0.0
      %1244 = vmatprep.subr.mxu0 0.0
      %1245 = vmatpush2.msra.mxu0 0.0
      %1246 = vmatprep.subr.mxu0 0.0
      %1247 = vmatpush2.msra.mxu0 0.0
      %1248 = vmatprep.subr.mxu0 0.0
      %1249 = vmatpush2.msra.mxu0 0.0
      %1250 = vmatprep.subr.mxu0 0.0
      %1251 = vmatpush2.msra.mxu0 0.0
      %1252 = vmatprep.subr.mxu0 0.0
      %1253 = vmatpush2.msra.mxu0 0.0
      %1254 = vmatprep.subr.mxu0 0.0
      %1255 = vmatpush2.msra.mxu0 0.0
      %1256 = vmatprep.subr.mxu0 0.0
      %1257 = vmatpush2.msra.mxu0 0.0
      %1258 = vmatprep.subr.mxu0 0.0
      %1259 = vmatpush2.msra.mxu0 0.0
      %1260 = vmatprep.subr.mxu0 0.0
      %1261 = vmatpush2.msra.mxu0 0.0
      %1262 = vmatprep.subr.mxu0 0.0
      %1263 = vmatpush2.msra.mxu0 0.0
      %1264 = vmatprep.subr.mxu0 0.0
      %1265 = vmatpush2.msra.mxu0 0.0
      %1266 = vmatprep.subr.mxu0 0.0
      %1267 = vmatpush2.msra.mxu0 0.0
      %1268 = vmatprep.mubr.f32.mxu0 0.0
      %1269 = vmatmul.mubr.f32.gmra.mxu0 %v1202
      %v1270 = vpop.f32.mrf.mxu0
      %v1271 = vadd.f32 %v1198, %v1270
      %v1272 = vpop.f32.mrf.mxu0
      %1273 = vdwg.mxu0
      %1274 = vrot.lane.b32.xlu0 %v798, 112
      %v1275 = vpop.permute.xlu0 %1274
      %1276 = vrot.lane.b32.xlu0 %v708, 112
      %v1277 = vpop.permute.xlu0 %1276
      %v1278 = vsel %vm799, %v1275, 0
      %v1280 = vsel %vm799, %v1277, 0
      %1282 = vmatprep.subr.mxu0 0.0
      %1283 = vmatpush1.xpose.msra.mxu0 0.0
      %1284 = vmatprep.subr.mxu0 0.0
      %1285 = vmatpush1.xpose.msra.mxu0 0.0
      %1286 = vmatprep.subr.mxu0 0.0
      %1287 = vmatpush1.xpose.msra.mxu0 0.0
      %1288 = vmatprep.subr.mxu0 0.0
      %1289 = vmatpush1.xpose.msra.mxu0 0.0
      %1290 = vmatprep.subr.mxu0 0.0
      %1291 = vmatpush1.xpose.msra.mxu0 0.0
      %1292 = vmatprep.subr.mxu0 0.0
      %1293 = vmatpush1.xpose.msra.mxu0 0.0
      %1294 = vmatprep.subr.mxu0 0.0
      %1295 = vmatpush1.xpose.msra.mxu0 0.0
      %1296 = vmatprep.subr.mxu0 0.0
      %1297 = vmatpush1.xpose.msra.mxu0 0.0
      %1298 = vmatprep.subr.mxu0 0.0
      %1299 = vmatpush1.xpose.msra.mxu0 0.0
      %1300 = vmatprep.subr.mxu0 0.0
      %1301 = vmatpush1.xpose.msra.mxu0 0.0
      %1302 = vmatprep.subr.mxu0 0.0
      %1303 = vmatpush1.xpose.msra.mxu0 0.0
      %1304 = vmatprep.subr.mxu0 0.0
      %1305 = vmatpush1.xpose.msra.mxu0 0.0
      %1306 = vmatprep.subr.mxu0 0.0
      %1307 = vmatpush1.xpose.msra.mxu0 0.0
      %1308 = vmatprep.subr.mxu0 0.0
      %1309 = vmatpush1.xpose.msra.mxu0 0.0
      %1310 = vmatprep.subr.mxu0 0.0
      %1311 = vmatpush1.xpose.msra.mxu0 0.0
      %1312 = vmatprep.subr.mxu0 0.0
      %1313 = vmatpush1.xpose.msra.mxu0 %v1280
      %1314 = vmatprep.subr.mxu0 0.0
      %1315 = vmatpush2.xpose.msra.mxu0 0.0
      %1316 = vmatprep.subr.mxu0 0.0
      %1317 = vmatpush2.xpose.msra.mxu0 0.0
      %1318 = vmatprep.subr.mxu0 0.0
      %1319 = vmatpush2.xpose.msra.mxu0 0.0
      %1320 = vmatprep.subr.mxu0 0.0
      %1321 = vmatpush2.xpose.msra.mxu0 0.0
      %1322 = vmatprep.subr.mxu0 0.0
      %1323 = vmatpush2.xpose.msra.mxu0 0.0
      %1324 = vmatprep.subr.mxu0 0.0
      %1325 = vmatpush2.xpose.msra.mxu0 0.0
      %1326 = vmatprep.subr.mxu0 0.0
      %1327 = vmatpush2.xpose.msra.mxu0 0.0
      %1328 = vmatprep.subr.mxu0 0.0
      %1329 = vmatpush2.xpose.msra.mxu0 0.0
      %1330 = vmatprep.subr.mxu0 0.0
      %1331 = vmatpush2.xpose.msra.mxu0 0.0
      %1332 = vmatprep.subr.mxu0 0.0
      %1333 = vmatpush2.xpose.msra.mxu0 0.0
      %1334 = vmatprep.subr.mxu0 0.0
      %1335 = vmatpush2.xpose.msra.mxu0 0.0
      %1336 = vmatprep.subr.mxu0 0.0
      %1337 = vmatpush2.xpose.msra.mxu0 0.0
      %1338 = vmatprep.subr.mxu0 0.0
      %1339 = vmatpush2.xpose.msra.mxu0 0.0
      %1340 = vmatprep.subr.mxu0 0.0
      %1341 = vmatpush2.xpose.msra.mxu0 0.0
      %1342 = vmatprep.subr.mxu0 0.0
      %1343 = vmatpush2.xpose.msra.mxu0 0.0
      %1344 = vmatprep.subr.mxu0 0.0
      %1345 = vmatpush2.xpose.msra.mxu0 0.0
      %1346 = vmatprep.mubr.f32.mxu0 0.0
      %1347 = vmatmul.mubr.f32.gmra.mxu0 %v1278
      %v1348 = vpop.f32.mrf.mxu0
      %v1349 = vadd.f32 %v797, %v1348
      %v1350 = vpop.f32.mrf.mxu0
      %1351 = vdwg.mxu0
      %v1352 = vsel %vm799, %v1349, -inf
      %1353 = vmax.xlane.f32.xlu0 %v1352
      %v1354 = vpop.xlane.xlu0 %1353
      %v1355 = vsub.f32 %v1349, %v1354
      %v1356 = vmul.f32 %v1355, 1.442695
      %v1357 = vpow.pop %v1356
      %v1358 = vsel %vm799, %v1357, 0.0
      %1359 = vadd.xlane.f32.xlu0 %v1358
      %v1360 = vpop.xlane.xlu0 %1359
      %v1361 = vrcp.pop %v1360
      %v1362 = vmul.f32 %v1357, %v1361
      %1363 = vrot.lane.b32.xlu0 %v789, 112
      %v1364 = vpop.permute.xlu0 %1363
      %v1367 = vsel %vm799, %v1362, 0
      %1369 = vmatprep.subr.mxu0 0.0
      %1370 = vmatpush1.msra.mxu0 0.0
      %1371 = vmatprep.subr.mxu0 0.0
      %1372 = vmatpush1.msra.mxu0 0.0
      %1373 = vmatprep.subr.mxu0 0.0
      %1374 = vmatpush1.msra.mxu0 0.0
      %1375 = vmatprep.subr.mxu0 0.0
      %1376 = vmatpush1.msra.mxu0 0.0
      %1377 = vmatprep.subr.mxu0 0.0
      %1378 = vmatpush1.msra.mxu0 0.0
      %1379 = vmatprep.subr.mxu0 0.0
      %1380 = vmatpush1.msra.mxu0 0.0
      %1381 = vmatprep.subr.mxu0 0.0
      %1382 = vmatpush1.msra.mxu0 0.0
      %1383 = vmatprep.subr.mxu0 0.0
      %1384 = vmatpush1.msra.mxu0 0.0
      %1385 = vmatprep.subr.mxu0 0.0
      %1386 = vmatpush1.msra.mxu0 0.0
      %1387 = vmatprep.subr.mxu0 0.0
      %1388 = vmatpush1.msra.mxu0 0.0
      %1389 = vmatprep.subr.mxu0 0.0
      %1390 = vmatpush1.msra.mxu0 0.0
      %1391 = vmatprep.subr.mxu0 0.0
      %1392 = vmatpush1.msra.mxu0 0.0
      %1393 = vmatprep.subr.mxu0 0.0
      %1394 = vmatpush1.msra.mxu0 0.0
      %1395 = vmatprep.subr.mxu0 0.0
      %1396 = vmatpush1.msra.mxu0 0.0
      %1397 = vmatprep.subr.mxu0 0.0
      %1398 = vmatpush1.msra.mxu0 0.0
      %1399 = vmatprep.subr.mxu0 0.0
      %1400 = vmatpush1.msra.mxu0 %v1364
      %1401 = vmatprep.subr.mxu0 0.0
      %1402 = vmatpush2.msra.mxu0 0.0
      %1403 = vmatprep.subr.mxu0 0.0
      %1404 = vmatpush2.msra.mxu0 0.0
      %1405 = vmatprep.subr.mxu0 0.0
      %1406 = vmatpush2.msra.mxu0 0.0
      %1407 = vmatprep.subr.mxu0 0.0
      %1408 = vmatpush2.msra.mxu0 0.0
      %1409 = vmatprep.subr.mxu0 0.0
      %1410 = vmatpush2.msra.mxu0 0.0
      %1411 = vmatprep.subr.mxu0 0.0
      %1412 = vmatpush2.msra.mxu0 0.0
      %1413 = vmatprep.subr.mxu0 0.0
      %1414 = vmatpush2.msra.mxu0 0.0
      %1415 = vmatprep.subr.mxu0 0.0
      %1416 = vmatpush2.msra.mxu0 0.0
      %1417 = vmatprep.subr.mxu0 0.0
      %1418 = vmatpush2.msra.mxu0 0.0
      %1419 = vmatprep.subr.mxu0 0.0
      %1420 = vmatpush2.msra.mxu0 0.0
      %1421 = vmatprep.subr.mxu0 0.0
      %1422 = vmatpush2.msra.mxu0 0.0
      %1423 = vmatprep.subr.mxu0 0.0
      %1424 = vmatpush2.msra.mxu0 0.0
      %1425 = vmatprep.subr.mxu0 0.0
      %1426 = vmatpush2.msra.mxu0 0.0
      %1427 = vmatprep.subr.mxu0 0.0
      %1428 = vmatpush2.msra.mxu0 0.0
      %1429 = vmatprep.subr.mxu0 0.0
      %1430 = vmatpush2.msra.mxu0 0.0
      %1431 = vmatprep.subr.mxu0 0.0
      %1432 = vmatpush2.msra.mxu0 0.0
      %1433 = vmatprep.mubr.f32.mxu0 0.0
      %1434 = vmatmul.mubr.f32.gmra.mxu0 %v1367
      %v1435 = vpop.f32.mrf.mxu0
      %v1436 = vadd.f32 0.0, %v1435
      %v1437 = vpop.f32.mrf.mxu0
      %1438 = vdwg.mxu0
      %v1439 = vld [vmem:[%s7 + $0x10] sm:$0xff]
      %v1441 = vsel %vm799, %v1436, 0
      %1443 = vmatprep.subr.mxu0 0.0
      %1444 = vmatpush1.msra.mxu0 0.0
      %1445 = vmatprep.subr.mxu0 0.0
      %1446 = vmatpush1.msra.mxu0 0.0
      %1447 = vmatprep.subr.mxu0 0.0
      %1448 = vmatpush1.msra.mxu0 0.0
      %1449 = vmatprep.subr.mxu0 0.0
      %1450 = vmatpush1.msra.mxu0 0.0
      %1451 = vmatprep.subr.mxu0 0.0
      %1452 = vmatpush1.msra.mxu0 0.0
      %1453 = vmatprep.subr.mxu0 0.0
      %1454 = vmatpush1.msra.mxu0 0.0
      %1455 = vmatprep.subr.mxu0 0.0
      %1456 = vmatpush1.msra.mxu0 0.0
      %1457 = vmatprep.subr.mxu0 0.0
      %1458 = vmatpush1.msra.mxu0 0.0
      %1459 = vmatprep.subr.mxu0 0.0
      %1460 = vmatpush1.msra.mxu0 0.0
      %1461 = vmatprep.subr.mxu0 0.0
      %1462 = vmatpush1.msra.mxu0 0.0
      %1463 = vmatprep.subr.mxu0 0.0
      %1464 = vmatpush1.msra.mxu0 0.0
      %1465 = vmatprep.subr.mxu0 0.0
      %1466 = vmatpush1.msra.mxu0 0.0
      %1467 = vmatprep.subr.mxu0 0.0
      %1468 = vmatpush1.msra.mxu0 0.0
      %1469 = vmatprep.subr.mxu0 0.0
      %1470 = vmatpush1.msra.mxu0 0.0
      %1471 = vmatprep.subr.mxu0 0.0
      %1472 = vmatpush1.msra.mxu0 0.0
      %1473 = vmatprep.subr.mxu0 0.0
      %1474 = vmatpush1.msra.mxu0 %v1439
      %1475 = vmatprep.subr.mxu0 0.0
      %1476 = vmatpush2.msra.mxu0 0.0
      %1477 = vmatprep.subr.mxu0 0.0
      %1478 = vmatpush2.msra.mxu0 0.0
      %1479 = vmatprep.subr.mxu0 0.0
      %1480 = vmatpush2.msra.mxu0 0.0
      %1481 = vmatprep.subr.mxu0 0.0
      %1482 = vmatpush2.msra.mxu0 0.0
      %1483 = vmatprep.subr.mxu0 0.0
      %1484 = vmatpush2.msra.mxu0 0.0
      %1485 = vmatprep.subr.mxu0 0.0
      %1486 = vmatpush2.msra.mxu0 0.0
      %1487 = vmatprep.subr.mxu0 0.0
      %1488 = vmatpush2.msra.mxu0 0.0
      %1489 = vmatprep.subr.mxu0 0.0
      %1490 = vmatpush2.msra.mxu0 0.0
      %1491 = vmatprep.subr.mxu0 0.0
      %1492 = vmatpush2.msra.mxu0 0.0
      %1493 = vmatprep.subr.mxu0 0.0
      %1494 = vmatpush2.msra.mxu0 0.0
      %1495 = vmatprep.subr.mxu0 0.0
      %1496 = vmatpush2.msra.mxu0 0.0
      %1497 = vmatprep.subr.mxu0 0.0
      %1498 = vmatpush2.msra.mxu0 0.0
      %1499 = vmatprep.subr.mxu0 0.0
      %1500 = vmatpush2.msra.mxu0 0.0
      %1501 = vmatprep.subr.mxu0 0.0
      %1502 = vmatpush2.msra.mxu0 0.0
      %1503 = vmatprep.subr.mxu0 0.0
      %1504 = vmatpush2.msra.mxu0 0.0
      %1505 = vmatprep.subr.mxu0 0.0
      %1506 = vmatpush2.msra.mxu0 0.0
      %1507 = vmatprep.mubr.f32.mxu0 0.0
      %1508 = vmatmul.mubr.f32.gmra.mxu0 %v1441
      %v1509 = vpop.f32.mrf.mxu0
      %v1510 = vadd.f32 0.0, %v1509
      %v1511 = vpop.f32.mrf.mxu0
      %1512 = vdwg.mxu0
      %v1513 = vadd.f32 %v1271, %v1510
      %1514 = vrot.lane.b32.xlu0 %v798, 104
      %v1515 = vpop.permute.xlu0 %1514
      %1516 = vrot.lane.b32.xlu0 %v708, 104
      %v1517 = vpop.permute.xlu0 %1516
      %v1518 = vsel %vm799, %v1515, 0
      %v1520 = vsel %vm799, %v1517, 0
      %1522 = vmatprep.subr.mxu0 0.0
      %1523 = vmatpush1.xpose.msra.mxu0 0.0
      %1524 = vmatprep.subr.mxu0 0.0
      %1525 = vmatpush1.xpose.msra.mxu0 0.0
      %1526 = vmatprep.subr.mxu0 0.0
      %1527 = vmatpush1.xpose.msra.mxu0 0.0
      %1528 = vmatprep.subr.mxu0 0.0
      %1529 = vmatpush1.xpose.msra.mxu0 0.0
      %1530 = vmatprep.subr.mxu0 0.0
      %1531 = vmatpush1.xpose.msra.mxu0 0.0
      %1532 = vmatprep.subr.mxu0 0.0
      %1533 = vmatpush1.xpose.msra.mxu0 0.0
      %1534 = vmatprep.subr.mxu0 0.0
      %1535 = vmatpush1.xpose.msra.mxu0 0.0
      %1536 = vmatprep.subr.mxu0 0.0
      %1537 = vmatpush1.xpose.msra.mxu0 0.0
      %1538 = vmatprep.subr.mxu0 0.0
      %1539 = vmatpush1.xpose.msra.mxu0 0.0
      %1540 = vmatprep.subr.mxu0 0.0
      %1541 = vmatpush1.xpose.msra.mxu0 0.0
      %1542 = vmatprep.subr.mxu0 0.0
      %1543 = vmatpush1.xpose.msra.mxu0 0.0
      %1544 = vmatprep.subr.mxu0 0.0
      %1545 = vmatpush1.xpose.msra.mxu0 0.0
      %1546 = vmatprep.subr.mxu0 0.0
      %1547 = vmatpush1.xpose.msra.mxu0 0.0
      %1548 = vmatprep.subr.mxu0 0.0
      %1549 = vmatpush1.xpose.msra.mxu0 0.0
      %1550 = vmatprep.subr.mxu0 0.0
      %1551 = vmatpush1.xpose.msra.mxu0 0.0
      %1552 = vmatprep.subr.mxu0 0.0
      %1553 = vmatpush1.xpose.msra.mxu0 %v1520
      %1554 = vmatprep.subr.mxu0 0.0
      %1555 = vmatpush2.xpose.msra.mxu0 0.0
      %1556 = vmatprep.subr.mxu0 0.0
      %1557 = vmatpush2.xpose.msra.mxu0 0.0
      %1558 = vmatprep.subr.mxu0 0.0
      %1559 = vmatpush2.xpose.msra.mxu0 0.0
      %1560 = vmatprep.subr.mxu0 0.0
      %1561 = vmatpush2.xpose.msra.mxu0 0.0
      %1562 = vmatprep.subr.mxu0 0.0
      %1563 = vmatpush2.xpose.msra.mxu0 0.0
      %1564 = vmatprep.subr.mxu0 0.0
      %1565 = vmatpush2.xpose.msra.mxu0 0.0
      %1566 = vmatprep.subr.mxu0 0.0
      %1567 = vmatpush2.xpose.msra.mxu0 0.0
      %1568 = vmatprep.subr.mxu0 0.0
      %1569 = vmatpush2.xpose.msra.mxu0 0.0
      %1570 = vmatprep.subr.mxu0 0.0
      %1571 = vmatpush2.xpose.msra.mxu0 0.0
      %1572 = vmatprep.subr.mxu0 0.0
      %1573 = vmatpush2.xpose.msra.mxu0 0.0
      %1574 = vmatprep.subr.mxu0 0.0
      %1575 = vmatpush2.xpose.msra.mxu0 0.0
      %1576 = vmatprep.subr.mxu0 0.0
      %1577 = vmatpush2.xpose.msra.mxu0 0.0
      %1578 = vmatprep.subr.mxu0 0.0
      %1579 = vmatpush2.xpose.msra.mxu0 0.0
      %1580 = vmatprep.subr.mxu0 0.0
      %1581 = vmatpush2.xpose.msra.mxu0 0.0
      %1582 = vmatprep.subr.mxu0 0.0
      %1583 = vmatpush2.xpose.msra.mxu0 0.0
      %1584 = vmatprep.subr.mxu0 0.0
      %1585 = vmatpush2.xpose.msra.mxu0 0.0
      %1586 = vmatprep.mubr.f32.mxu0 0.0
      %1587 = vmatmul.mubr.f32.gmra.mxu0 %v1518
      %v1588 = vpop.f32.mrf.mxu0
      %v1589 = vadd.f32 %v797, %v1588
      %v1590 = vpop.f32.mrf.mxu0
      %1591 = vdwg.mxu0
      %v1592 = vsel %vm799, %v1589, -inf
      %1593 = vmax.xlane.f32.xlu0 %v1592
      %v1594 = vpop.xlane.xlu0 %1593
      %v1595 = vsub.f32 %v1589, %v1594
      %v1596 = vmul.f32 %v1595, 1.442695
      %v1597 = vpow.pop %v1596
      %v1598 = vsel %vm799, %v1597, 0.0
      %1599 = vadd.xlane.f32.xlu0 %v1598
      %v1600 = vpop.xlane.xlu0 %1599
      %v1601 = vrcp.pop %v1600
      %v1602 = vmul.f32 %v1597, %v1601
      %1603 = vrot.lane.b32.xlu0 %v789, 104
      %v1604 = vpop.permute.xlu0 %1603
      %v1607 = vsel %vm799, %v1602, 0
      %1609 = vmatprep.subr.mxu0 0.0
      %1610 = vmatpush1.msra.mxu0 0.0
      %1611 = vmatprep.subr.mxu0 0.0
      %1612 = vmatpush1.msra.mxu0 0.0
      %1613 = vmatprep.subr.mxu0 0.0
      %1614 = vmatpush1.msra.mxu0 0.0
      %1615 = vmatprep.subr.mxu0 0.0
      %1616 = vmatpush1.msra.mxu0 0.0
      %1617 = vmatprep.subr.mxu0 0.0
      %1618 = vmatpush1.msra.mxu0 0.0
      %1619 = vmatprep.subr.mxu0 0.0
      %1620 = vmatpush1.msra.mxu0 0.0
      %1621 = vmatprep.subr.mxu0 0.0
      %1622 = vmatpush1.msra.mxu0 0.0
      %1623 = vmatprep.subr.mxu0 0.0
      %1624 = vmatpush1.msra.mxu0 0.0
      %1625 = vmatprep.subr.mxu0 0.0
      %1626 = vmatpush1.msra.mxu0 0.0
      %1627 = vmatprep.subr.mxu0 0.0
      %1628 = vmatpush1.msra.mxu0 0.0
      %1629 = vmatprep.subr.mxu0 0.0
      %1630 = vmatpush1.msra.mxu0 0.0
      %1631 = vmatprep.subr.mxu0 0.0
      %1632 = vmatpush1.msra.mxu0 0.0
      %1633 = vmatprep.subr.mxu0 0.0
      %1634 = vmatpush1.msra.mxu0 0.0
      %1635 = vmatprep.subr.mxu0 0.0
      %1636 = vmatpush1.msra.mxu0 0.0
      %1637 = vmatprep.subr.mxu0 0.0
      %1638 = vmatpush1.msra.mxu0 0.0
      %1639 = vmatprep.subr.mxu0 0.0
      %1640 = vmatpush1.msra.mxu0 %v1604
      %1641 = vmatprep.subr.mxu0 0.0
      %1642 = vmatpush2.msra.mxu0 0.0
      %1643 = vmatprep.subr.mxu0 0.0
      %1644 = vmatpush2.msra.mxu0 0.0
      %1645 = vmatprep.subr.mxu0 0.0
      %1646 = vmatpush2.msra.mxu0 0.0
      %1647 = vmatprep.subr.mxu0 0.0
      %1648 = vmatpush2.msra.mxu0 0.0
      %1649 = vmatprep.subr.mxu0 0.0
      %1650 = vmatpush2.msra.mxu0 0.0
      %1651 = vmatprep.subr.mxu0 0.0
      %1652 = vmatpush2.msra.mxu0 0.0
      %1653 = vmatprep.subr.mxu0 0.0
      %1654 = vmatpush2.msra.mxu0 0.0
      %1655 = vmatprep.subr.mxu0 0.0
      %1656 = vmatpush2.msra.mxu0 0.0
      %1657 = vmatprep.subr.mxu0 0.0
      %1658 = vmatpush2.msra.mxu0 0.0
      %1659 = vmatprep.subr.mxu0 0.0
      %1660 = vmatpush2.msra.mxu0 0.0
      %1661 = vmatprep.subr.mxu0 0.0
      %1662 = vmatpush2.msra.mxu0 0.0
      %1663 = vmatprep.subr.mxu0 0.0
      %1664 = vmatpush2.msra.mxu0 0.0
      %1665 = vmatprep.subr.mxu0 0.0
      %1666 = vmatpush2.msra.mxu0 0.0
      %1667 = vmatprep.subr.mxu0 0.0
      %1668 = vmatpush2.msra.mxu0 0.0
      %1669 = vmatprep.subr.mxu0 0.0
      %1670 = vmatpush2.msra.mxu0 0.0
      %1671 = vmatprep.subr.mxu0 0.0
      %1672 = vmatpush2.msra.mxu0 0.0
      %1673 = vmatprep.mubr.f32.mxu0 0.0
      %1674 = vmatmul.mubr.f32.gmra.mxu0 %v1607
      %v1675 = vpop.f32.mrf.mxu0
      %v1676 = vadd.f32 0.0, %v1675
      %v1677 = vpop.f32.mrf.mxu0
      %1678 = vdwg.mxu0
      %v1679 = vld [vmem:[%s7 + $0x18] sm:$0xff]
      %v1681 = vsel %vm799, %v1676, 0
      %1683 = vmatprep.subr.mxu0 0.0
      %1684 = vmatpush1.msra.mxu0 0.0
      %1685 = vmatprep.subr.mxu0 0.0
      %1686 = vmatpush1.msra.mxu0 0.0
      %1687 = vmatprep.subr.mxu0 0.0
      %1688 = vmatpush1.msra.mxu0 0.0
      %1689 = vmatprep.subr.mxu0 0.0
      %1690 = vmatpush1.msra.mxu0 0.0
      %1691 = vmatprep.subr.mxu0 0.0
      %1692 = vmatpush1.msra.mxu0 0.0
      %1693 = vmatprep.subr.mxu0 0.0
      %1694 = vmatpush1.msra.mxu0 0.0
      %1695 = vmatprep.subr.mxu0 0.0
      %1696 = vmatpush1.msra.mxu0 0.0
      %1697 = vmatprep.subr.mxu0 0.0
      %1698 = vmatpush1.msra.mxu0 0.0
      %1699 = vmatprep.subr.mxu0 0.0
      %1700 = vmatpush1.msra.mxu0 0.0
      %1701 = vmatprep.subr.mxu0 0.0
      %1702 = vmatpush1.msra.mxu0 0.0
      %1703 = vmatprep.subr.mxu0 0.0
      %1704 = vmatpush1.msra.mxu0 0.0
      %1705 = vmatprep.subr.mxu0 0.0
      %1706 = vmatpush1.msra.mxu0 0.0
      %1707 = vmatprep.subr.mxu0 0.0
      %1708 = vmatpush1.msra.mxu0 0.0
      %1709 = vmatprep.subr.mxu0 0.0
      %1710 = vmatpush1.msra.mxu0 0.0
      %1711 = vmatprep.subr.mxu0 0.0
      %1712 = vmatpush1.msra.mxu0 0.0
      %1713 = vmatprep.subr.mxu0 0.0
      %1714 = vmatpush1.msra.mxu0 %v1679
      %1715 = vmatprep.subr.mxu0 0.0
      %1716 = vmatpush2.msra.mxu0 0.0
      %1717 = vmatprep.subr.mxu0 0.0
      %1718 = vmatpush2.msra.mxu0 0.0
      %1719 = vmatprep.subr.mxu0 0.0
      %1720 = vmatpush2.msra.mxu0 0.0
      %1721 = vmatprep.subr.mxu0 0.0
      %1722 = vmatpush2.msra.mxu0 0.0
      %1723 = vmatprep.subr.mxu0 0.0
      %1724 = vmatpush2.msra.mxu0 0.0
      %1725 = vmatprep.subr.mxu0 0.0
      %1726 = vmatpush2.msra.mxu0 0.0
      %1727 = vmatprep.subr.mxu0 0.0
      %1728 = vmatpush2.msra.mxu0 0.0
      %1729 = vmatprep.subr.mxu0 0.0
      %1730 = vmatpush2.msra.mxu0 0.0
      %1731 = vmatprep.subr.mxu0 0.0
      %1732 = vmatpush2.msra.mxu0 0.0
      %1733 = vmatprep.subr.mxu0 0.0
      %1734 = vmatpush2.msra.mxu0 0.0
      %1735 = vmatprep.subr.mxu0 0.0
      %1736 = vmatpush2.msra.mxu0 0.0
      %1737 = vmatprep.subr.mxu0 0.0
      %1738 = vmatpush2.msra.mxu0 0.0
      %1739 = vmatprep.subr.mxu0 0.0
      %1740 = vmatpush2.msra.mxu0 0.0
      %1741 = vmatprep.subr.mxu0 0.0
      %1742 = vmatpush2.msra.mxu0 0.0
      %1743 = vmatprep.subr.mxu0 0.0
      %1744 = vmatpush2.msra.mxu0 0.0
      %1745 = vmatprep.subr.mxu0 0.0
      %1746 = vmatpush2.msra.mxu0 0.0
      %1747 = vmatprep.mubr.f32.mxu0 0.0
      %1748 = vmatmul.mubr.f32.gmra.mxu0 %v1681
      %v1749 = vpop.f32.mrf.mxu0
      %v1750 = vadd.f32 0.0, %v1749
      %v1751 = vpop.f32.mrf.mxu0
      %1752 = vdwg.mxu0
      %v1753 = vadd.f32 %v1513, %v1750
      %v1754 = vadd.f32 %v544, %v1753
      %v1755 = vld [vmem:[%s8] sm:$0x1]
      %v1757 = vlaneseq
      %v1758 = vshrl.u32 %v1757, 7
      %v1759 = vsub.s32 0, %v1758
      %v1760 = vrot.slane %v1755, %v1759
      %v1762 = vadd.f32 %v1754, %v1760
      %v1763 = vld [vmem:[%s9] sm:$0x1]
      %v1764 = vld [vmem:[%s10] sm:$0x1]
      %v1765 = vsel %vm556, %v1762, 0.0
      %1766 = vadd.xlane.f32.xlu0 %v1765
      %v1767 = vpop.xlane.xlu0 %1766
      %v1768 = vrcp.pop 32.0
      %v1769 = vmul.f32 %v1767, %v1768
      %v1770 = vsub.f32 %v1762, %v1769
      %v1771 = vmul.f32 %v1770, %v1770
      %v1772 = vsel %vm556, %v1771, 0.0
      %1773 = vadd.xlane.f32.xlu0 %v1772
      %v1774 = vpop.xlane.xlu0 %1773
      %v1775 = vmul.f32 %v1774, %v1768
      %v1776 = vadd.f32 %v1775, 1e-05
      %v1777 = vrsqrt.pop %v1776
      %v1778 = vmul.f32 %v1770, %v1777
      %v1780 = vlaneseq
      %v1781 = vshrl.u32 %v1780, 7
      %v1782 = vsub.s32 0, %v1781
      %v1783 = vrot.slane %v1763, %v1782
      %v1785 = vmul.f32 %v1778, %v1783
      %v1787 = vlaneseq
      %v1788 = vshrl.u32 %v1787, 7
      %v1789 = vsub.s32 0, %v1788
      %v1790 = vrot.slane %v1764, %v1789
      %v1792 = vadd.f32 %v1785, %v1790
      %v1793 = vld [vmem:[%s11] sm:$0xff]
      %v1794 = vld [vmem:[%s11 + $0x8] sm:$0xff]
      %v1795 = vld [vmem:[%s11 + $0x10] sm:$0xff]
      %v1796 = vld [vmem:[%s11 + $0x18] sm:$0xff]
      %v1797 = vld [vmem:[%s12] sm:$0x1]
      %v1799 = vlaneseq
      %v1800 = vshrl.u32 %v1799, 7
      %v1801 = vsub.s32 0, %v1800
      %v1802 = vrot.slane %v1797, %v1801
      %v1805 = vsel %vm556, %v1792, 0
      %1807 = vmatprep.subr.mxu0 0.0
      %1808 = vmatpush1.msra.mxu0 0.0
      %1809 = vmatprep.subr.mxu0 0.0
      %1810 = vmatpush1.msra.mxu0 0.0
      %1811 = vmatprep.subr.mxu0 0.0
      %1812 = vmatpush1.msra.mxu0 0.0
      %1813 = vmatprep.subr.mxu0 0.0
      %1814 = vmatpush1.msra.mxu0 0.0
      %1815 = vmatprep.subr.mxu0 0.0
      %1816 = vmatpush1.msra.mxu0 0.0
      %1817 = vmatprep.subr.mxu0 0.0
      %1818 = vmatpush1.msra.mxu0 0.0
      %1819 = vmatprep.subr.mxu0 0.0
      %1820 = vmatpush1.msra.mxu0 0.0
      %1821 = vmatprep.subr.mxu0 0.0
      %1822 = vmatpush1.msra.mxu0 0.0
      %1823 = vmatprep.subr.mxu0 0.0
      %1824 = vmatpush1.msra.mxu0 0.0
      %1825 = vmatprep.subr.mxu0 0.0
      %1826 = vmatpush1.msra.mxu0 0.0
      %1827 = vmatprep.subr.mxu0 0.0
      %1828 = vmatpush1.msra.mxu0 0.0
      %1829 = vmatprep.subr.mxu0 0.0
      %1830 = vmatpush1.msra.mxu0 0.0
      %1831 = vmatprep.subr.mxu0 0.0
      %1832 = vmatpush1.msra.mxu0 %v1796
      %1833 = vmatprep.subr.mxu0 0.0
      %1834 = vmatpush1.msra.mxu0 %v1795
      %1835 = vmatprep.subr.mxu0 0.0
      %1836 = vmatpush1.msra.mxu0 %v1794
      %1837 = vmatprep.subr.mxu0 0.0
      %1838 = vmatpush1.msra.mxu0 %v1793
      %1839 = vmatprep.subr.mxu0 0.0
      %1840 = vmatpush2.msra.mxu0 0.0
      %1841 = vmatprep.subr.mxu0 0.0
      %1842 = vmatpush2.msra.mxu0 0.0
      %1843 = vmatprep.subr.mxu0 0.0
      %1844 = vmatpush2.msra.mxu0 0.0
      %1845 = vmatprep.subr.mxu0 0.0
      %1846 = vmatpush2.msra.mxu0 0.0
      %1847 = vmatprep.subr.mxu0 0.0
      %1848 = vmatpush2.msra.mxu0 0.0
      %1849 = vmatprep.subr.mxu0 0.0
      %1850 = vmatpush2.msra.mxu0 0.0
      %1851 = vmatprep.subr.mxu0 0.0
      %1852 = vmatpush2.msra.mxu0 0.0
      %1853 = vmatprep.subr.mxu0 0.0
      %1854 = vmatpush2.msra.mxu0 0.0
      %1855 = vmatprep.subr.mxu0 0.0
      %1856 = vmatpush2.msra.mxu0 0.0
      %1857 = vmatprep.subr.mxu0 0.0
      %1858 = vmatpush2.msra.mxu0 0.0
      %1859 = vmatprep.subr.mxu0 0.0
      %1860 = vmatpush2.msra.mxu0 0.0
      %1861 = vmatprep.subr.mxu0 0.0
      %1862 = vmatpush2.msra.mxu0 0.0
      %1863 = vmatprep.subr.mxu0 0.0
      %1864 = vmatpush2.msra.mxu0 0.0
      %1865 = vmatprep.subr.mxu0 0.0
      %1866 = vmatpush2.msra.mxu0 0.0
      %1867 = vmatprep.subr.mxu0 0.0
      %1868 = vmatpush2.msra.mxu0 0.0
      %1869 = vmatprep.subr.mxu0 0.0
      %1870 = vmatpush2.msra.mxu0 0.0
      %1871 = vmatprep.mubr.f32.mxu0 0.0
      %1872 = vmatmul.mubr.f32.gmra.mxu0 %v1805
      %v1873 = vpop.f32.mrf.mxu0
      %v1874 = vadd.f32 %v1802, %v1873
      %v1875 = vpop.f32.mrf.mxu0
      %1876 = vdwg.mxu0
      %v1877 = vmul.f32 %v1874, 0.5
      %v1878 = vmul.f32 %v1874, 0.70710677
      %v1879 = vand.u32 2147483647, %v1878
      %v1880 = vmul.f32 %v1879, 0.3275911
      %v1881 = vadd.f32 %v1880, 1.0
      %v1882 = vrcp.pop %v1881
      %v1883 = vmul.f32 %v1882, 1.0614054
      %v1884 = vadd.f32 %v1883, -1.4531521
      %v1885 = vmul.f32 %v1884, %v1882
      %v1886 = vadd.f32 %v1885, 1.4214138
      %v1887 = vmul.f32 %v1886, %v1882
      %v1888 = vadd.f32 %v1887, -0.28449672
      %v1889 = vmul.f32 %v1888, %v1882
      %v1890 = vadd.f32 %v1889, 0.2548296
      %v1891 = vmul.f32 %v1890, %v1882
      %v1892 = vsub.f32 0.0, %v1879
      %v1893 = vmul.f32 %v1892, %v1879
      %v1894 = vmul.f32 %v1893, 1.442695
      %v1895 = vpow.pop %v1894
      %v1896 = vmul.f32 %v1891, %v1895
      %v1897 = vsub.f32 1.0, %v1896
      %vm1898 = vcmp.ge.f32.partialorder %v1878, 0.0
      %v1899 = vsub.f32 0.0, %v1897
      %v1900 = vsel %vm1898, %v1897, %v1899
      %v1901 = vadd.f32 %v1900, 1.0
      %v1902 = vmul.f32 %v1877, %v1901
      %v1903 = vld [vmem:[%s13] sm:$0xff]
      %v1904 = vld [vmem:[%s13 + $0x8] sm:$0xff]
      %v1905 = vld [vmem:[%s13 + $0x10] sm:$0xff]
      %v1906 = vld [vmem:[%s13 + $0x18] sm:$0xff]
      %v1907 = vld [vmem:[%s13 + $0x20] sm:$0xff]
      %v1908 = vld [vmem:[%s13 + $0x28] sm:$0xff]
      %v1909 = vld [vmem:[%s13 + $0x30] sm:$0xff]
      %v1910 = vld [vmem:[%s13 + $0x38] sm:$0xff]
      %v1911 = vld [vmem:[%s13 + $0x40] sm:$0xff]
      %v1912 = vld [vmem:[%s13 + $0x48] sm:$0xff]
      %v1913 = vld [vmem:[%s13 + $0x50] sm:$0xff]
      %v1914 = vld [vmem:[%s13 + $0x58] sm:$0xff]
      %v1915 = vld [vmem:[%s13 + $0x60] sm:$0xff]
      %v1916 = vld [vmem:[%s13 + $0x68] sm:$0xff]
      %v1917 = vld [vmem:[%s13 + $0x70] sm:$0xff]
      %v1918 = vld [vmem:[%s13 + $0x78] sm:$0xff]
      %v1919 = vld [vmem:[%s14] sm:$0x1]
      %v1921 = vlaneseq
      %v1922 = vshrl.u32 %v1921, 7
      %v1923 = vsub.s32 0, %v1922
      %v1924 = vrot.slane %v1919, %v1923
      %1926 = vmatprep.subr.mxu0 0.0
      %1927 = vmatpush1.msra.mxu0 %v1918
      %1928 = vmatprep.subr.mxu0 0.0
      %1929 = vmatpush1.msra.mxu0 %v1917
      %1930 = vmatprep.subr.mxu0 0.0
      %1931 = vmatpush1.msra.mxu0 %v1916
      %1932 = vmatprep.subr.mxu0 0.0
      %1933 = vmatpush1.msra.mxu0 %v1915
      %1934 = vmatprep.subr.mxu0 0.0
      %1935 = vmatpush1.msra.mxu0 %v1914
      %1936 = vmatprep.subr.mxu0 0.0
      %1937 = vmatpush1.msra.mxu0 %v1913
      %1938 = vmatprep.subr.mxu0 0.0
      %1939 = vmatpush1.msra.mxu0 %v1912
      %1940 = vmatprep.subr.mxu0 0.0
      %1941 = vmatpush1.msra.mxu0 %v1911
      %1942 = vmatprep.subr.mxu0 0.0
      %1943 = vmatpush1.msra.mxu0 %v1910
      %1944 = vmatprep.subr.mxu0 0.0
      %1945 = vmatpush1.msra.mxu0 %v1909
      %1946 = vmatprep.subr.mxu0 0.0
      %1947 = vmatpush1.msra.mxu0 %v1908
      %1948 = vmatprep.subr.mxu0 0.0
      %1949 = vmatpush1.msra.mxu0 %v1907
      %1950 = vmatprep.subr.mxu0 0.0
      %1951 = vmatpush1.msra.mxu0 %v1906
      %1952 = vmatprep.subr.mxu0 0.0
      %1953 = vmatpush1.msra.mxu0 %v1905
      %1954 = vmatprep.subr.mxu0 0.0
      %1955 = vmatpush1.msra.mxu0 %v1904
      %1956 = vmatprep.subr.mxu0 0.0
      %1957 = vmatpush1.msra.mxu0 %v1903
      %1958 = vmatprep.subr.mxu0 0.0
      %1959 = vmatpush2.msra.mxu0 0.0
      %1960 = vmatprep.subr.mxu0 0.0
      %1961 = vmatpush2.msra.mxu0 0.0
      %1962 = vmatprep.subr.mxu0 0.0
      %1963 = vmatpush2.msra.mxu0 0.0
      %1964 = vmatprep.subr.mxu0 0.0
      %1965 = vmatpush2.msra.mxu0 0.0
      %1966 = vmatprep.subr.mxu0 0.0
      %1967 = vmatpush2.msra.mxu0 0.0
      %1968 = vmatprep.subr.mxu0 0.0
      %1969 = vmatpush2.msra.mxu0 0.0
      %1970 = vmatprep.subr.mxu0 0.0
      %1971 = vmatpush2.msra.mxu0 0.0
      %1972 = vmatprep.subr.mxu0 0.0
      %1973 = vmatpush2.msra.mxu0 0.0
      %1974 = vmatprep.subr.mxu0 0.0
      %1975 = vmatpush2.msra.mxu0 0.0
      %1976 = vmatprep.subr.mxu0 0.0
      %1977 = vmatpush2.msra.mxu0 0.0
      %1978 = vmatprep.subr.mxu0 0.0
      %1979 = vmatpush2.msra.mxu0 0.0
      %1980 = vmatprep.subr.mxu0 0.0
      %1981 = vmatpush2.msra.mxu0 0.0
      %1982 = vmatprep.subr.mxu0 0.0
      %1983 = vmatpush2.msra.mxu0 0.0
      %1984 = vmatprep.subr.mxu0 0.0
      %1985 = vmatpush2.msra.mxu0 0.0
      %1986 = vmatprep.subr.mxu0 0.0
      %1987 = vmatpush2.msra.mxu0 0.0
      %1988 = vmatprep.subr.mxu0 0.0
      %1989 = vmatpush2.msra.mxu0 0.0
      %1990 = vmatprep.mubr.f32.mxu0 0.0
      %1991 = vmatmul.mubr.f32.gmra.mxu0 %v1902
      %v1992 = vpop.f32.mrf.mxu0
      %v1993 = vadd.f32 %v1924, %v1992
      %v1994 = vpop.f32.mrf.mxu0
      %1995 = vdwg.mxu0
      %v1996 = vadd.f32 %v1792, %v1993
      %v1997 = vld [vmem:[%s15] sm:$0x1]
      %v1998 = vld [vmem:[%s16] sm:$0x1]
      %v1999 = vsel %vm556, %v1996, 0.0
      %2000 = vadd.xlane.f32.xlu0 %v1999
      %v2001 = vpop.xlane.xlu0 %2000
      %v2002 = vmul.f32 %v2001, %v1768
      %v2003 = vsub.f32 %v1996, %v2002
      %v2004 = vmul.f32 %v2003, %v2003
      %v2005 = vsel %vm556, %v2004, 0.0
      %2006 = vadd.xlane.f32.xlu0 %v2005
      %v2007 = vpop.xlane.xlu0 %2006
      %v2008 = vmul.f32 %v2007, %v1768
      %v2009 = vadd.f32 %v2008, 1e-05
      %v2010 = vrsqrt.pop %v2009
      %v2011 = vmul.f32 %v2003, %v2010
      %v2013 = vlaneseq
      %v2014 = vshrl.u32 %v2013, 7
      %v2015 = vsub.s32 0, %v2014
      %v2016 = vrot.slane %v1997, %v2015
      %v2018 = vmul.f32 %v2011, %v2016
      %v2020 = vlaneseq
      %v2021 = vshrl.u32 %v2020, 7
      %v2022 = vsub.s32 0, %v2021
      %v2023 = vrot.slane %v1998, %v2022
      %v2025 = vadd.f32 %v2018, %v2023
      %2026 = vst.msk [vmem:[%s543] sm:$0xff] %vm556, %v2025
      %p2027 = scmp.lt.s32.totalorder %s28, 1
      %s2028 = scalar_select %p2027, %s28, 1
      %s2029 = smul.addr %s2028, 8
      %s2030 = scalar_lea.vmem %s17, %s2029
      // Predicated region
      $region89: #{gpt2_forward.3} parent=87 // pred_check
        %p2031 = pneg %p408
      $region90: #{gpt2_forward.3} parent=87 // pred_check_branch
        %2033 = sbr.rel (%p2031) target = $region92
      $region91: #{gpt2_forward.3} parent=87 // pred_region
        _
      $region92: #{gpt2_forward.3} parent=87 // pred_fallthru
        _
    $region88: #{gpt2_forward.3} parent=5 // pred_fallthru
      _
    %p2034 = scmp.le.s32.totalorder 2, %s23
    // Predicated region
    $region93: #{gpt2_forward.3} parent=5 // pred_check
      %p2035 = pneg %p2034
    $region94: #{gpt2_forward.3} parent=5 // pred_check_branch
      %2037 = sbr.rel (%p2035) target = $region96
    $region95: #{gpt2_forward.3} parent=5 // pred_region
      %s2038 = ssub.s32 %s23, 2
      // Predicated region
      $region97: #{gpt2_forward.3} parent=95 // pred_check
        %p2039 = pneg %p414
      $region98: #{gpt2_forward.3} parent=95 // pred_check_branch
        %2041 = sbr.rel (%p2039) target = $region100
      $region99: #{gpt2_forward.3} parent=95 // pred_region
        %p2042 = scmp.lt.s32.totalorder %s29, 1
        %s2043 = scalar_select %p2042, %s29, 1
        %s2044 = smul.addr %s2043, 8
        %s2045 = scalar_lea.vmem %s17, %s2044
      $region100: #{gpt2_forward.3} parent=95 // pred_fallthru
        _
    $region96: #{gpt2_forward.3} parent=5 // pred_fallthru
      _
  $region6: #{gpt2_forward.3} parent=0 // loop_footer
    %s27 = sadd.s32 1, %s23
  $region7: #{gpt2_forward.3} parent=0 // loop_footer_branch
    %22 = sbr.rel target = $region3
  $region8: #{gpt2_forward.3} parent=0 // loop_exit
    _

</llo_original>
